<compile_context>
chip_gen: v5e
topology: v5e:2x2
jax: 0.10.0
libtpu: 0.0.40
codegen_flags: <defaults>
</compile_context>

<pallas_src>
from functools import partial

import numpy as np
import jax
import jax.numpy as jnp
from jax.experimental import pallas as pl
from jax.experimental.pallas import tpu as pltpu


def _round_up(n: int, m: int) -> int:
    return ((n + m - 1) // m) * m


def _num_tensorcores_per_chip() -> int:
    """v7x has 2 TensorCores per chip; v5e/v6e have 1. Best-effort detection."""
    try:
        kind = jax.devices()[0].device_kind.lower()
    except Exception:
        return 1
    return 2 if "v7" in kind else 1


def mlp_kernel(x_ref, w_in_ref, b_in_ref, w_hid_ref, b_hid_ref,
               w_out_ref, b_out_ref, out_ref):
    """Full MLP forward for one batch tile, entirely in VMEM.

    MXU operands are bf16 (input + weights), accumulation / bias-add / ReLU run
    in f32 on the VPU; activations are re-narrowed to bf16 immediately after
    each ReLU so only the bf16 copy stays live into the next matmul.
    """
    # Input layer: (bt, F)bf16 @ (F, S)bf16 -> f32 acc
    acc = jnp.dot(x_ref[...], w_in_ref[...], preferred_element_type=jnp.float32)
    h = jnp.maximum(acc + b_in_ref[...], 0.0).astype(jnp.bfloat16)

    # Hidden layers: statically unrolled over the stacked (n_hidden, S, S) block.
    n_hidden = w_hid_ref.shape[0]
    for i in range(n_hidden):
        acc = jnp.dot(h, w_hid_ref[i], preferred_element_type=jnp.float32)
        h = jnp.maximum(acc + b_hid_ref[i], 0.0).astype(jnp.bfloat16)

    # Output layer (lane-dense padded width, no ReLU), stored in f32.
    out = jnp.dot(h, w_out_ref[...], preferred_element_type=jnp.float32) + b_out_ref[...]
    out_ref[...] = out.astype(out_ref.dtype)


def init_params(key, n_feature=4, size=128, out_size=1):
    """Deterministic init mimicking torch.nn.Linear default U[-1/sqrt(fan_in), +]."""
    dims = [n_feature] + [size] * 7 + [out_size]
    params = []
    for i in range(len(dims) - 1):
        key, kw, kb = jax.random.split(key, 3)
        bound = 1.0 / np.sqrt(dims[i])
        w = jax.random.uniform(kw, (dims[i], dims[i + 1]), jnp.float32, -bound, bound)
        b = jax.random.uniform(kb, (dims[i + 1],), jnp.float32, -bound, bound)
        params.append((w, b))
    return params


def pack_params(params):
    """One-time packing: bf16 weight casts, hidden-layer stacking, lane-dense
    (multiple-of-128) padding of the output layer. Call once at init, NOT per
    forward call."""
    w_in, b_in = params[0]
    w_out, b_out = params[-1]
    hidden = params[1:-1]
    S = w_in.shape[1]
    out_size = w_out.shape[1]
    out_pad = _round_up(out_size, 128)

    packed = {
        "w_in": w_in.astype(jnp.bfloat16),                                   # (F, S)
        "b_in": b_in.reshape(1, S).astype(jnp.float32),                      # (1, S)
        "w_hid": jnp.stack([w for w, _ in hidden]).astype(jnp.bfloat16),     # (H, S, S)
        "b_hid": jnp.stack([b.reshape(1, S) for _, b in hidden]
                           ).astype(jnp.float32),                            # (H, 1, S)
        "w_out": jnp.pad(w_out, ((0, 0), (0, out_pad - out_size))
                         ).astype(jnp.bfloat16),                             # (S, OUT_PAD)
        "b_out": jnp.pad(b_out.reshape(1, out_size),
                         ((0, 0), (0, out_pad - out_size))
                         ).astype(jnp.float32),                              # (1, OUT_PAD)
    }
    return packed, out_size


@partial(jax.jit, static_argnames=("out_size", "num_tc", "max_batch_tile"))
def nn_model_forward(x, packed, *, out_size, num_tc=1, max_batch_tile=1024):
    """x: (B, ...) -> flatten -> dropout(eval)=identity -> MLP via Pallas kernel."""
    B = x.shape[0]
    x2 = x.reshape(B, -1).astype(jnp.bfloat16)          # nn.Flatten + bf16 MXU operand
    F = x2.shape[1]

    w_in, b_in = packed["w_in"], packed["b_in"]
    w_hid, b_hid = packed["w_hid"], packed["b_hid"]
    w_out, b_out = packed["w_out"], packed["b_out"]
    S = w_in.shape[1]
    n_hidden = w_hid.shape[0]
    OUT_PAD = w_out.shape[1]

    # Generation-aware batch tile: aim for `num_tc` grid steps (1 on v5e/v6e so
    # the latency-bound grid is a single step; 2 on v7x so both TensorCores get
    # work), multiple of 128 for dense MXU M-granules, capped for VMEM safety.
    bt = _round_up(max(pl.cdiv(B, num_tc), 1), 128)
    bt = min(bt, max_batch_tile)
    # Pad the batch to a whole number of (bt * num_tc) so the grid step count is
    # a multiple of num_tc (keeps the two v7x cores load-balanced).
    B_pad = _round_up(B, bt * num_tc)
    if B_pad != B:
        x2 = jnp.pad(x2, ((0, B_pad - B), (0, 0)))
    grid = (B_pad // bt,)

    in_specs = [
        pl.BlockSpec((bt, F), lambda i: (i, 0)),
        # Weights/biases: constant index_map -> resident across the grid
        # (Pallas does not re-DMA a block whose index does not change).
        pl.BlockSpec((F, S), lambda i: (0, 0)),
        pl.BlockSpec((1, S), lambda i: (0, 0)),
        pl.BlockSpec((n_hidden, S, S), lambda i: (0, 0, 0)),
        pl.BlockSpec((n_hidden, 1, S), lambda i: (0, 0, 0)),
        pl.BlockSpec((S, OUT_PAD), lambda i: (0, 0)),
        pl.BlockSpec((1, OUT_PAD), lambda i: (0, 0)),
    ]
    out_spec = pl.BlockSpec((bt, OUT_PAD), lambda i: (i, 0))

    flat = (x2, w_in, b_in, w_hid, b_hid, w_out, b_out)

    flops = 2 * B_pad * (F * S + n_hidden * S * S + S * OUT_PAD)
    bytes_accessed = int(sum(int(a.size) * a.dtype.itemsize for a in flat)
                         + B_pad * OUT_PAD * 4)

    out = pl.pallas_call(
        mlp_kernel,
        out_shape=jax.ShapeDtypeStruct((B_pad, OUT_PAD), jnp.float32),
        grid=grid,
        in_specs=in_specs,
        out_specs=out_spec,
        compiler_params=pltpu.CompilerParams(
            dimension_semantics=("parallel",)),
        cost_estimate=pl.CostEstimate(
            flops=flops, transcendentals=0, bytes_accessed=bytes_accessed),
    )(*flat)

    return out[:B, :out_size]


def mlp_ref(x, params):
    """Pure-JAX reference mirroring the kernel's mixed precision
    (bf16 MXU operands, f32 accumulation / bias-add / ReLU)."""
    h = x.reshape(x.shape[0], -1).astype(jnp.float32)
    n = len(params)
    for i, (w, b) in enumerate(params):
        h = jnp.dot(h.astype(jnp.bfloat16), w.astype(jnp.bfloat16),
                    preferred_element_type=jnp.float32) + b
        if i < n - 1:
            h = jnp.maximum(h, 0.0)
    return h


if __name__ == "__main__":
    key = jax.random.PRNGKey(0)
    k_x, k_p = jax.random.split(key)

    # Small shapes: batch=500 (exercises batch padding and the generation-aware
    # tiling: one 512-row step on v5e/v6e, two 256-row steps on v7x), input
    # (2,2) spatial flattened to n_feature=4, hidden size=128 (module default
    # 500 scaled down), out_size=1.
    n_feature, size, out_size, batch = 4, 128, 1, 500
    x = jax.random.normal(k_x, (batch, 2, 2), jnp.float32)   # flattens to (500, 4)

    params = init_params(k_p, n_feature=n_feature, size=size, out_size=out_size)
    packed, out_size = pack_params(params)          # one-time weight packing
    num_tc = _num_tensorcores_per_chip()

    out = nn_model_forward(x, packed, out_size=out_size, num_tc=num_tc)
    out = jax.block_until_ready(out)

    ref = mlp_ref(x, params)
    np.testing.assert_allclose(np.asarray(out), np.asarray(ref), rtol=1e-2, atol=1e-2)

    print("KERNEL_OK")
</pallas_src>

<mosaic_0001>
module attributes {stable_mosaic.version = 11 : i64} {
  func.func @mlp_kernel(%arg0: i32, %arg1: memref<512x4xbf16, #tpu.memory_space<vmem>>, %arg2: memref<4x128xbf16, #tpu.memory_space<vmem>>, %arg3: memref<1x128xf32, #tpu.memory_space<vmem>>, %arg4: memref<6x128x128xbf16, #tpu.memory_space<vmem>>, %arg5: memref<6x1x128xf32, #tpu.memory_space<vmem>>, %arg6: memref<128x128xbf16, #tpu.memory_space<vmem>>, %arg7: memref<1x128xf32, #tpu.memory_space<vmem>>, %arg8: memref<512x128xf32, #tpu.memory_space<vmem>>) attributes {dimension_semantics = [#tpu.dimension_semantics<parallel>], iteration_bounds = array<i64: 1>, scalar_prefetch = 0 : i64, scratch_operands = 0 : i64, tpu.core_type = #tpu.core_type<tc>, window_params = [{transform_indices = @transform_0, window_bounds = array<i64: 512, 4>}, {pipeline_mode = #tpu.pipeline_mode<synchronous>, transform_indices = @transform_1, window_bounds = array<i64: 4, 128>}, {pipeline_mode = #tpu.pipeline_mode<synchronous>, transform_indices = @transform_2, window_bounds = array<i64: 1, 128>}, {pipeline_mode = #tpu.pipeline_mode<synchronous>, transform_indices = @transform_3, window_bounds = array<i64: 6, 128, 128>}, {pipeline_mode = #tpu.pipeline_mode<synchronous>, transform_indices = @transform_4, window_bounds = array<i64: 6, 1, 128>}, {pipeline_mode = #tpu.pipeline_mode<synchronous>, transform_indices = @transform_5, window_bounds = array<i64: 128, 128>}, {pipeline_mode = #tpu.pipeline_mode<synchronous>, transform_indices = @transform_6, window_bounds = array<i64: 1, 128>}, {transform_indices = @transform_7, window_bounds = array<i64: 512, 128>}]} {
    %c0 = arith.constant 0 : index
    %c0_0 = arith.constant 0 : index
    %0 = vector.load %arg1[%c0, %c0_0] : memref<512x4xbf16, #tpu.memory_space<vmem>>, vector<512x4xbf16>
    %c0_1 = arith.constant 0 : index
    %c0_2 = arith.constant 0 : index
    %1 = vector.load %arg2[%c0_1, %c0_2] : memref<4x128xbf16, #tpu.memory_space<vmem>>, vector<4x128xbf16>
    %cst = arith.constant dense<0.000000e+00> : vector<512x128xf32>
    %2 = tpu.matmul %0, %1, %cst {dimension_numbers = #tpu.dot_dimension_numbers<[1], [0], [0], [1], [0, 0, 1, 1], [], []>} : vector<512x4xbf16>, vector<4x128xbf16>, vector<512x128xf32> -> vector<512x128xf32>
    %c0_3 = arith.constant 0 : index
    %c0_4 = arith.constant 0 : index
    %3 = vector.load %arg3[%c0_3, %c0_4] : memref<1x128xf32, #tpu.memory_space<vmem>>, vector<1x128xf32>
    %4 = vector.broadcast %3 : vector<1x128xf32> to vector<512x128xf32>
    %5 = arith.addf %2, %4 : vector<512x128xf32>
    %cst_5 = arith.constant 0.000000e+00 : f32
    %6 = vector.broadcast %cst_5 : f32 to vector<512x128xf32>
    %7 = arith.maximumf %5, %6 : vector<512x128xf32>
    %8 = arith.truncf %7 : vector<512x128xf32> to vector<512x128xbf16>
    %c0_6 = arith.constant 0 : index
    %c0_7 = arith.constant 0 : index
    %c0_8 = arith.constant 0 : index
    %9 = vector.load %arg4[%c0_6, %c0_7, %c0_8] : memref<6x128x128xbf16, #tpu.memory_space<vmem>>, vector<1x128x128xbf16>
    %10 = vector.shape_cast %9 : vector<1x128x128xbf16> to vector<128x128xbf16>
    %cst_9 = arith.constant dense<0.000000e+00> : vector<512x128xf32>
    %11 = tpu.matmul %8, %10, %cst_9 {dimension_numbers = #tpu.dot_dimension_numbers<[1], [0], [0], [1], [0, 0, 1, 1], [], []>} : vector<512x128xbf16>, vector<128x128xbf16>, vector<512x128xf32> -> vector<512x128xf32>
    %c0_10 = arith.constant 0 : index
    %c0_11 = arith.constant 0 : index
    %c0_12 = arith.constant 0 : index
    %12 = vector.load %arg5[%c0_10, %c0_11, %c0_12] : memref<6x1x128xf32, #tpu.memory_space<vmem>>, vector<1x1x128xf32>
    %13 = vector.shape_cast %12 : vector<1x1x128xf32> to vector<1x128xf32>
    %14 = vector.broadcast %13 : vector<1x128xf32> to vector<512x128xf32>
    %15 = arith.addf %11, %14 : vector<512x128xf32>
    %cst_13 = arith.constant 0.000000e+00 : f32
    %16 = vector.broadcast %cst_13 : f32 to vector<512x128xf32>
    %17 = arith.maximumf %15, %16 : vector<512x128xf32>
    %18 = arith.truncf %17 : vector<512x128xf32> to vector<512x128xbf16>
    %c1 = arith.constant 1 : index
    %c0_14 = arith.constant 0 : index
    %c0_15 = arith.constant 0 : index
    %19 = vector.load %arg4[%c1, %c0_14, %c0_15] : memref<6x128x128xbf16, #tpu.memory_space<vmem>>, vector<1x128x128xbf16>
    %20 = vector.shape_cast %19 : vector<1x128x128xbf16> to vector<128x128xbf16>
    %cst_16 = arith.constant dense<0.000000e+00> : vector<512x128xf32>
    %21 = tpu.matmul %18, %20, %cst_16 {dimension_numbers = #tpu.dot_dimension_numbers<[1], [0], [0], [1], [0, 0, 1, 1], [], []>} : vector<512x128xbf16>, vector<128x128xbf16>, vector<512x128xf32> -> vector<512x128xf32>
    %c1_17 = arith.constant 1 : index
    %c0_18 = arith.constant 0 : index
    %c0_19 = arith.constant 0 : index
    %22 = vector.load %arg5[%c1_17, %c0_18, %c0_19] : memref<6x1x128xf32, #tpu.memory_space<vmem>>, vector<1x1x128xf32>
    %23 = vector.shape_cast %22 : vector<1x1x128xf32> to vector<1x128xf32>
    %24 = vector.broadcast %23 : vector<1x128xf32> to vector<512x128xf32>
    %25 = arith.addf %21, %24 : vector<512x128xf32>
    %cst_20 = arith.constant 0.000000e+00 : f32
    %26 = vector.broadcast %cst_20 : f32 to vector<512x128xf32>
    %27 = arith.maximumf %25, %26 : vector<512x128xf32>
    %28 = arith.truncf %27 : vector<512x128xf32> to vector<512x128xbf16>
    %c2 = arith.constant 2 : index
    %c0_21 = arith.constant 0 : index
    %c0_22 = arith.constant 0 : index
    %29 = vector.load %arg4[%c2, %c0_21, %c0_22] : memref<6x128x128xbf16, #tpu.memory_space<vmem>>, vector<1x128x128xbf16>
    %30 = vector.shape_cast %29 : vector<1x128x128xbf16> to vector<128x128xbf16>
    %cst_23 = arith.constant dense<0.000000e+00> : vector<512x128xf32>
    %31 = tpu.matmul %28, %30, %cst_23 {dimension_numbers = #tpu.dot_dimension_numbers<[1], [0], [0], [1], [0, 0, 1, 1], [], []>} : vector<512x128xbf16>, vector<128x128xbf16>, vector<512x128xf32> -> vector<512x128xf32>
    %c2_24 = arith.constant 2 : index
    %c0_25 = arith.constant 0 : index
    %c0_26 = arith.constant 0 : index
    %32 = vector.load %arg5[%c2_24, %c0_25, %c0_26] : memref<6x1x128xf32, #tpu.memory_space<vmem>>, vector<1x1x128xf32>
    %33 = vector.shape_cast %32 : vector<1x1x128xf32> to vector<1x128xf32>
    %34 = vector.broadcast %33 : vector<1x128xf32> to vector<512x128xf32>
    %35 = arith.addf %31, %34 : vector<512x128xf32>
    %cst_27 = arith.constant 0.000000e+00 : f32
    %36 = vector.broadcast %cst_27 : f32 to vector<512x128xf32>
    %37 = arith.maximumf %35, %36 : vector<512x128xf32>
    %38 = arith.truncf %37 : vector<512x128xf32> to vector<512x128xbf16>
    %c3 = arith.constant 3 : index
    %c0_28 = arith.constant 0 : index
    %c0_29 = arith.constant 0 : index
    %39 = vector.load %arg4[%c3, %c0_28, %c0_29] : memref<6x128x128xbf16, #tpu.memory_space<vmem>>, vector<1x128x128xbf16>
    %40 = vector.shape_cast %39 : vector<1x128x128xbf16> to vector<128x128xbf16>
    %cst_30 = arith.constant dense<0.000000e+00> : vector<512x128xf32>
    %41 = tpu.matmul %38, %40, %cst_30 {dimension_numbers = #tpu.dot_dimension_numbers<[1], [0], [0], [1], [0, 0, 1, 1], [], []>} : vector<512x128xbf16>, vector<128x128xbf16>, vector<512x128xf32> -> vector<512x128xf32>
    %c3_31 = arith.constant 3 : index
    %c0_32 = arith.constant 0 : index
    %c0_33 = arith.constant 0 : index
    %42 = vector.load %arg5[%c3_31, %c0_32, %c0_33] : memref<6x1x128xf32, #tpu.memory_space<vmem>>, vector<1x1x128xf32>
    %43 = vector.shape_cast %42 : vector<1x1x128xf32> to vector<1x128xf32>
    %44 = vector.broadcast %43 : vector<1x128xf32> to vector<512x128xf32>
    %45 = arith.addf %41, %44 : vector<512x128xf32>
    %cst_34 = arith.constant 0.000000e+00 : f32
    %46 = vector.broadcast %cst_34 : f32 to vector<512x128xf32>
    %47 = arith.maximumf %45, %46 : vector<512x128xf32>
    %48 = arith.truncf %47 : vector<512x128xf32> to vector<512x128xbf16>
    %c4 = arith.constant 4 : index
    %c0_35 = arith.constant 0 : index
    %c0_36 = arith.constant 0 : index
    %49 = vector.load %arg4[%c4, %c0_35, %c0_36] : memref<6x128x128xbf16, #tpu.memory_space<vmem>>, vector<1x128x128xbf16>
    %50 = vector.shape_cast %49 : vector<1x128x128xbf16> to vector<128x128xbf16>
    %cst_37 = arith.constant dense<0.000000e+00> : vector<512x128xf32>
    %51 = tpu.matmul %48, %50, %cst_37 {dimension_numbers = #tpu.dot_dimension_numbers<[1], [0], [0], [1], [0, 0, 1, 1], [], []>} : vector<512x128xbf16>, vector<128x128xbf16>, vector<512x128xf32> -> vector<512x128xf32>
    %c4_38 = arith.constant 4 : index
    %c0_39 = arith.constant 0 : index
    %c0_40 = arith.constant 0 : index
    %52 = vector.load %arg5[%c4_38, %c0_39, %c0_40] : memref<6x1x128xf32, #tpu.memory_space<vmem>>, vector<1x1x128xf32>
    %53 = vector.shape_cast %52 : vector<1x1x128xf32> to vector<1x128xf32>
    %54 = vector.broadcast %53 : vector<1x128xf32> to vector<512x128xf32>
    %55 = arith.addf %51, %54 : vector<512x128xf32>
    %cst_41 = arith.constant 0.000000e+00 : f32
    %56 = vector.broadcast %cst_41 : f32 to vector<512x128xf32>
    %57 = arith.maximumf %55, %56 : vector<512x128xf32>
    %58 = arith.truncf %57 : vector<512x128xf32> to vector<512x128xbf16>
    %c5 = arith.constant 5 : index
    %c0_42 = arith.constant 0 : index
    %c0_43 = arith.constant 0 : index
    %59 = vector.load %arg4[%c5, %c0_42, %c0_43] : memref<6x128x128xbf16, #tpu.memory_space<vmem>>, vector<1x128x128xbf16>
    %60 = vector.shape_cast %59 : vector<1x128x128xbf16> to vector<128x128xbf16>
    %cst_44 = arith.constant dense<0.000000e+00> : vector<512x128xf32>
    %61 = tpu.matmul %58, %60, %cst_44 {dimension_numbers = #tpu.dot_dimension_numbers<[1], [0], [0], [1], [0, 0, 1, 1], [], []>} : vector<512x128xbf16>, vector<128x128xbf16>, vector<512x128xf32> -> vector<512x128xf32>
    %c5_45 = arith.constant 5 : index
    %c0_46 = arith.constant 0 : index
    %c0_47 = arith.constant 0 : index
    %62 = vector.load %arg5[%c5_45, %c0_46, %c0_47] : memref<6x1x128xf32, #tpu.memory_space<vmem>>, vector<1x1x128xf32>
    %63 = vector.shape_cast %62 : vector<1x1x128xf32> to vector<1x128xf32>
    %64 = vector.broadcast %63 : vector<1x128xf32> to vector<512x128xf32>
    %65 = arith.addf %61, %64 : vector<512x128xf32>
    %cst_48 = arith.constant 0.000000e+00 : f32
    %66 = vector.broadcast %cst_48 : f32 to vector<512x128xf32>
    %67 = arith.maximumf %65, %66 : vector<512x128xf32>
    %68 = arith.truncf %67 : vector<512x128xf32> to vector<512x128xbf16>
    %c0_49 = arith.constant 0 : index
    %c0_50 = arith.constant 0 : index
    %69 = vector.load %arg6[%c0_49, %c0_50] : memref<128x128xbf16, #tpu.memory_space<vmem>>, vector<128x128xbf16>
    %cst_51 = arith.constant dense<0.000000e+00> : vector<512x128xf32>
    %70 = tpu.matmul %68, %69, %cst_51 {dimension_numbers = #tpu.dot_dimension_numbers<[1], [0], [0], [1], [0, 0, 1, 1], [], []>} : vector<512x128xbf16>, vector<128x128xbf16>, vector<512x128xf32> -> vector<512x128xf32>
    %c0_52 = arith.constant 0 : index
    %c0_53 = arith.constant 0 : index
    %71 = vector.load %arg7[%c0_52, %c0_53] : memref<1x128xf32, #tpu.memory_space<vmem>>, vector<1x128xf32>
    %72 = vector.broadcast %71 : vector<1x128xf32> to vector<512x128xf32>
    %73 = arith.addf %70, %72 : vector<512x128xf32>
    %c0_54 = arith.constant 0 : index
    %c0_55 = arith.constant 0 : index
    %74 = vector.load %arg8[%c0_54, %c0_55] : memref<512x128xf32, #tpu.memory_space<vmem>>, vector<512x128xf32>
    tpu.vector_store %arg8[%c0_54, %c0_55], %73 {strides = array<i32>} : memref<512x128xf32, #tpu.memory_space<vmem>>, vector<512x128xf32>,
    return
  }
  func.func @transform_0(%arg0: i32) -> (i32, i32) {
    %c0_i32 = arith.constant 0 : i32
    %c0_i32_0 = arith.constant 0 : i32
    return %arg0, %c0_i32 : i32, i32
  }
  func.func @transform_1(%arg0: i32) -> (i32, i32) {
    %c0_i32 = arith.constant 0 : i32
    %c0_i32_0 = arith.constant 0 : i32
    %c0_i32_1 = arith.constant 0 : i32
    return %c0_i32, %c0_i32_0 : i32, i32
  }
  func.func @transform_2(%arg0: i32) -> (i32, i32) {
    %c0_i32 = arith.constant 0 : i32
    %c0_i32_0 = arith.constant 0 : i32
    %c0_i32_1 = arith.constant 0 : i32
    return %c0_i32, %c0_i32_0 : i32, i32
  }
  func.func @transform_3(%arg0: i32) -> (i32, i32, i32) {
    %c0_i32 = arith.constant 0 : i32
    %c0_i32_0 = arith.constant 0 : i32
    %c0_i32_1 = arith.constant 0 : i32
    %c0_i32_2 = arith.constant 0 : i32
    return %c0_i32, %c0_i32_0, %c0_i32_1 : i32, i32, i32
  }
  func.func @transform_4(%arg0: i32) -> (i32, i32, i32) {
    %c0_i32 = arith.constant 0 : i32
    %c0_i32_0 = arith.constant 0 : i32
    %c0_i32_1 = arith.constant 0 : i32
    %c0_i32_2 = arith.constant 0 : i32
    return %c0_i32, %c0_i32_0, %c0_i32_1 : i32, i32, i32
  }
  func.func @transform_5(%arg0: i32) -> (i32, i32) {
    %c0_i32 = arith.constant 0 : i32
    %c0_i32_0 = arith.constant 0 : i32
    %c0_i32_1 = arith.constant 0 : i32
    return %c0_i32, %c0_i32_0 : i32, i32
  }
  func.func @transform_6(%arg0: i32) -> (i32, i32) {
    %c0_i32 = arith.constant 0 : i32
    %c0_i32_0 = arith.constant 0 : i32
    %c0_i32_1 = arith.constant 0 : i32
    return %c0_i32, %c0_i32_0 : i32, i32
  }
  func.func @transform_7(%arg0: i32) -> (i32, i32) {
    %c0_i32 = arith.constant 0 : i32
    %c0_i32_0 = arith.constant 0 : i32
    return %arg0, %c0_i32 : i32, i32
  }
}

</mosaic_0001>

<llo_original>
// kernel: nn_model_forward.1
$region0: #{nn_model_forward.1}
  #allocation0 [shape = 'u32[]', space=smem, size = 0x4, offset = 0x4, fixed_abs, tag = 'smem constant byte address 0x4 - core index']
  #allocation1 [shape = 'u32[72,128]{1,0:T(1,128)}', space=vmem, size = 0x9000, scoped, tag = 'internal scratch']
  %s0 = inlined_call_operand.vmem [shape: bf16[512,4], index: 0, kind: input, shape index: {}]
  %s1 = inlined_call_operand.vmem [shape: bf16[4,128], index: 1, kind: input, shape index: {}]
  %s2 = inlined_call_operand.vmem [shape: f32[1,128], index: 2, kind: input, shape index: {}]
  %s3 = inlined_call_operand.vmem [shape: bf16[6,128,128], index: 3, kind: input, shape index: {}]
  %s4 = inlined_call_operand.vmem [shape: f32[6,1,128], index: 4, kind: input, shape index: {}]
  %s5 = inlined_call_operand.vmem [shape: bf16[128,128], index: 5, kind: input, shape index: {}]
  %s6 = inlined_call_operand.vmem [shape: f32[1,128], index: 6, kind: input, shape index: {}]
  %s7 = inlined_call_operand.vmem [shape: f32[512,128], index: 7, kind: output, shape index: {}]
  %s8 = sld [smem:[#allocation0]]
  $region38: #{nn_model_forward.1} parent=0
    _
  %s10 = ssub.s32 1, %s8
  %s11 = scalar_select 0, %s10, %s8
  // Predicated region
  $region2: #{nn_model_forward.1} parent=0 // pred_check
    _
  $region3: #{nn_model_forward.1} parent=0 // pred_check_branch
    %13 = sbr.rel (0) target = $region5
  $region4: #{nn_model_forward.1} parent=0 // pred_region
    _
  $region5: #{nn_model_forward.1} parent=0 // pred_fallthru
    _
  // Predicated region
  $region6: #{nn_model_forward.1} parent=0 // pred_check
    _
  $region7: #{nn_model_forward.1} parent=0 // pred_check_branch
    %15 = sbr.rel (0) target = $region9
  $region8: #{nn_model_forward.1} parent=0 // pred_region
    _
  $region9: #{nn_model_forward.1} parent=0 // pred_fallthru
    _
  // Predicated region
  $region10: #{nn_model_forward.1} parent=0 // pred_check
    _
  $region11: #{nn_model_forward.1} parent=0 // pred_check_branch
    %17 = sbr.rel (0) target = $region13
  $region12: #{nn_model_forward.1} parent=0 // pred_region
    _
  $region13: #{nn_model_forward.1} parent=0 // pred_fallthru
    _
  // Predicated region
  $region14: #{nn_model_forward.1} parent=0 // pred_check
    _
  $region15: #{nn_model_forward.1} parent=0 // pred_check_branch
    %19 = sbr.rel (0) target = $region17
  $region16: #{nn_model_forward.1} parent=0 // pred_region
    _
  $region17: #{nn_model_forward.1} parent=0 // pred_fallthru
    _
  // Predicated region
  $region18: #{nn_model_forward.1} parent=0 // pred_check
    _
  $region19: #{nn_model_forward.1} parent=0 // pred_check_branch
    %21 = sbr.rel (0) target = $region21
  $region20: #{nn_model_forward.1} parent=0 // pred_region
    _
  $region21: #{nn_model_forward.1} parent=0 // pred_fallthru
    _
  // Predicated region
  $region22: #{nn_model_forward.1} parent=0 // pred_check
    _
  $region23: #{nn_model_forward.1} parent=0 // pred_check_branch
    %23 = sbr.rel (0) target = $region25
  $region24: #{nn_model_forward.1} parent=0 // pred_region
    _
  $region25: #{nn_model_forward.1} parent=0 // pred_fallthru
    _
  // Predicated region
  $region26: #{nn_model_forward.1} parent=0 // pred_check
    _
  $region27: #{nn_model_forward.1} parent=0 // pred_check_branch
    %25 = sbr.rel (0) target = $region29
  $region28: #{nn_model_forward.1} parent=0 // pred_region
    _
  $region29: #{nn_model_forward.1} parent=0 // pred_fallthru
    _
  %v27 = vld [vmem:[%s0] sm:$0xf]
  %v28 = vld [vmem:[%s0 + $0x4] sm:$0xf]
  %v29 = vld [vmem:[%s0 + $0x8] sm:$0xf]
  %v30 = vld [vmem:[%s0 + $0xc] sm:$0xf]
  %v31 = vld [vmem:[%s0 + $0x10] sm:$0xf]
  %v32 = vld [vmem:[%s0 + $0x14] sm:$0xf]
  %v33 = vld [vmem:[%s0 + $0x18] sm:$0xf]
  %v34 = vld [vmem:[%s0 + $0x1c] sm:$0xf]
  %v35 = vld [vmem:[%s0 + $0x20] sm:$0xf]
  %v36 = vld [vmem:[%s0 + $0x24] sm:$0xf]
  %v37 = vld [vmem:[%s0 + $0x28] sm:$0xf]
  %v38 = vld [vmem:[%s0 + $0x2c] sm:$0xf]
  %v39 = vld [vmem:[%s0 + $0x30] sm:$0xf]
  %v40 = vld [vmem:[%s0 + $0x34] sm:$0xf]
  %v41 = vld [vmem:[%s0 + $0x38] sm:$0xf]
  %v42 = vld [vmem:[%s0 + $0x3c] sm:$0xf]
  %v43 = vld [vmem:[%s0 + $0x40] sm:$0xf]
  %v44 = vld [vmem:[%s0 + $0x44] sm:$0xf]
  %v45 = vld [vmem:[%s0 + $0x48] sm:$0xf]
  %v46 = vld [vmem:[%s0 + $0x4c] sm:$0xf]
  %v47 = vld [vmem:[%s0 + $0x50] sm:$0xf]
  %v48 = vld [vmem:[%s0 + $0x54] sm:$0xf]
  %v49 = vld [vmem:[%s0 + $0x58] sm:$0xf]
  %v50 = vld [vmem:[%s0 + $0x5c] sm:$0xf]
  %v51 = vld [vmem:[%s0 + $0x60] sm:$0xf]
  %v52 = vld [vmem:[%s0 + $0x64] sm:$0xf]
  %v53 = vld [vmem:[%s0 + $0x68] sm:$0xf]
  %v54 = vld [vmem:[%s0 + $0x6c] sm:$0xf]
  %v55 = vld [vmem:[%s0 + $0x70] sm:$0xf]
  %v56 = vld [vmem:[%s0 + $0x74] sm:$0xf]
  %v57 = vld [vmem:[%s0 + $0x78] sm:$0xf]
  %v58 = vld [vmem:[%s0 + $0x7c] sm:$0xf]
  %v59 = vld [vmem:[%s0 + $0x80] sm:$0xf]
  %v60 = vld [vmem:[%s0 + $0x84] sm:$0xf]
  %v61 = vld [vmem:[%s0 + $0x88] sm:$0xf]
  %v62 = vld [vmem:[%s0 + $0x8c] sm:$0xf]
  %v63 = vld [vmem:[%s0 + $0x90] sm:$0xf]
  %v64 = vld [vmem:[%s0 + $0x94] sm:$0xf]
  %v65 = vld [vmem:[%s0 + $0x98] sm:$0xf]
  %v66 = vld [vmem:[%s0 + $0x9c] sm:$0xf]
  %v67 = vld [vmem:[%s0 + $0xa0] sm:$0xf]
  %v68 = vld [vmem:[%s0 + $0xa4] sm:$0xf]
  %v69 = vld [vmem:[%s0 + $0xa8] sm:$0xf]
  %v70 = vld [vmem:[%s0 + $0xac] sm:$0xf]
  %v71 = vld [vmem:[%s0 + $0xb0] sm:$0xf]
  %v72 = vld [vmem:[%s0 + $0xb4] sm:$0xf]
  %v73 = vld [vmem:[%s0 + $0xb8] sm:$0xf]
  %v74 = vld [vmem:[%s0 + $0xbc] sm:$0xf]
  %v75 = vld [vmem:[%s0 + $0xc0] sm:$0xf]
  %v76 = vld [vmem:[%s0 + $0xc4] sm:$0xf]
  %v77 = vld [vmem:[%s0 + $0xc8] sm:$0xf]
  %v78 = vld [vmem:[%s0 + $0xcc] sm:$0xf]
  %v79 = vld [vmem:[%s0 + $0xd0] sm:$0xf]
  %v80 = vld [vmem:[%s0 + $0xd4] sm:$0xf]
  %v81 = vld [vmem:[%s0 + $0xd8] sm:$0xf]
  %v82 = vld [vmem:[%s0 + $0xdc] sm:$0xf]
  %v83 = vld [vmem:[%s0 + $0xe0] sm:$0xf]
  %v84 = vld [vmem:[%s0 + $0xe4] sm:$0xf]
  %v85 = vld [vmem:[%s0 + $0xe8] sm:$0xf]
  %v86 = vld [vmem:[%s0 + $0xec] sm:$0xf]
  %v87 = vld [vmem:[%s0 + $0xf0] sm:$0xf]
  %v88 = vld [vmem:[%s0 + $0xf4] sm:$0xf]
  %v89 = vld [vmem:[%s0 + $0xf8] sm:$0xf]
  %v90 = vld [vmem:[%s0 + $0xfc] sm:$0xf]
  %v91 = vld [vmem:[%s1] sm:$0x3]
  %v92 = vld [vmem:[%s2] sm:$0x1]
  %v94 = vperm.slane %v92, 0
  %v160 = vunpack.c.l.b16 %v27
  %v161 = vunpack.c.l.b16 %v28
  %v162 = vunpack.c.l.b16 %v29
  %v163 = vunpack.c.l.b16 %v30
  %v164 = vunpack.c.l.b16 %v31
  %v165 = vunpack.c.l.b16 %v32
  %v166 = vunpack.c.l.b16 %v33
  %v167 = vunpack.c.l.b16 %v34
  %v168 = vunpack.c.l.b16 %v35
  %v169 = vunpack.c.l.b16 %v36
  %v170 = vunpack.c.l.b16 %v37
  %v171 = vunpack.c.l.b16 %v38
  %v172 = vunpack.c.l.b16 %v39
  %v173 = vunpack.c.l.b16 %v40
  %v174 = vunpack.c.l.b16 %v41
  %v175 = vunpack.c.l.b16 %v42
  %v176 = vunpack.c.l.b16 %v43
  %v177 = vunpack.c.l.b16 %v44
  %v178 = vunpack.c.l.b16 %v45
  %v179 = vunpack.c.l.b16 %v46
  %v180 = vunpack.c.l.b16 %v47
  %v181 = vunpack.c.l.b16 %v48
  %v182 = vunpack.c.l.b16 %v49
  %v183 = vunpack.c.l.b16 %v50
  %v184 = vunpack.c.l.b16 %v51
  %v185 = vunpack.c.l.b16 %v52
  %v186 = vunpack.c.l.b16 %v53
  %v187 = vunpack.c.l.b16 %v54
  %v188 = vunpack.c.l.b16 %v55
  %v189 = vunpack.c.l.b16 %v56
  %v190 = vunpack.c.l.b16 %v57
  %v191 = vunpack.c.l.b16 %v58
  %v192 = vunpack.c.l.b16 %v59
  %v193 = vunpack.c.l.b16 %v60
  %v194 = vunpack.c.l.b16 %v61
  %v195 = vunpack.c.l.b16 %v62
  %v196 = vunpack.c.l.b16 %v63
  %v197 = vunpack.c.l.b16 %v64
  %v198 = vunpack.c.l.b16 %v65
  %v199 = vunpack.c.l.b16 %v66
  %v200 = vunpack.c.l.b16 %v67
  %v201 = vunpack.c.l.b16 %v68
  %v202 = vunpack.c.l.b16 %v69
  %v203 = vunpack.c.l.b16 %v70
  %v204 = vunpack.c.l.b16 %v71
  %v205 = vunpack.c.l.b16 %v72
  %v206 = vunpack.c.l.b16 %v73
  %v207 = vunpack.c.l.b16 %v74
  %v208 = vunpack.c.l.b16 %v75
  %v209 = vunpack.c.l.b16 %v76
  %v210 = vunpack.c.l.b16 %v77
  %v211 = vunpack.c.l.b16 %v78
  %v212 = vunpack.c.l.b16 %v79
  %v213 = vunpack.c.l.b16 %v80
  %v214 = vunpack.c.l.b16 %v81
  %v215 = vunpack.c.l.b16 %v82
  %v216 = vunpack.c.l.b16 %v83
  %v217 = vunpack.c.l.b16 %v84
  %v218 = vunpack.c.l.b16 %v85
  %v219 = vunpack.c.l.b16 %v86
  %v220 = vunpack.c.l.b16 %v87
  %v221 = vunpack.c.l.b16 %v88
  %v222 = vunpack.c.l.b16 %v89
  %v223 = vunpack.c.l.b16 %v90
  %v224 = vpack.c.b16 %v161, %v160
  %v225 = vpack.c.b16 %v163, %v162
  %v226 = vpack.c.b16 %v165, %v164
  %v227 = vpack.c.b16 %v167, %v166
  %v228 = vpack.c.b16 %v169, %v168
  %v229 = vpack.c.b16 %v171, %v170
  %v230 = vpack.c.b16 %v173, %v172
  %v231 = vpack.c.b16 %v175, %v174
  %v232 = vpack.c.b16 %v177, %v176
  %v233 = vpack.c.b16 %v179, %v178
  %v234 = vpack.c.b16 %v181, %v180
  %v235 = vpack.c.b16 %v183, %v182
  %v236 = vpack.c.b16 %v185, %v184
  %v237 = vpack.c.b16 %v187, %v186
  %v238 = vpack.c.b16 %v189, %v188
  %v239 = vpack.c.b16 %v191, %v190
  %v240 = vpack.c.b16 %v193, %v192
  %v241 = vpack.c.b16 %v195, %v194
  %v242 = vpack.c.b16 %v197, %v196
  %v243 = vpack.c.b16 %v199, %v198
  %v244 = vpack.c.b16 %v201, %v200
  %v245 = vpack.c.b16 %v203, %v202
  %v246 = vpack.c.b16 %v205, %v204
  %v247 = vpack.c.b16 %v207, %v206
  %v248 = vpack.c.b16 %v209, %v208
  %v249 = vpack.c.b16 %v211, %v210
  %v250 = vpack.c.b16 %v213, %v212
  %v251 = vpack.c.b16 %v215, %v214
  %v252 = vpack.c.b16 %v217, %v216
  %v253 = vpack.c.b16 %v219, %v218
  %v254 = vpack.c.b16 %v221, %v220
  %v255 = vpack.c.b16 %v223, %v222
  %vm256 = vcmask 31744
  %v258 = vsel %vm256, %v224, 0
  %v261 = vsel %vm256, %v225, 0
  %v264 = vsel %vm256, %v226, 0
  %v267 = vsel %vm256, %v227, 0
  %v270 = vsel %vm256, %v228, 0
  %v273 = vsel %vm256, %v229, 0
  %v276 = vsel %vm256, %v230, 0
  %v279 = vsel %vm256, %v231, 0
  %v282 = vsel %vm256, %v232, 0
  %v285 = vsel %vm256, %v233, 0
  %v288 = vsel %vm256, %v234, 0
  %v291 = vsel %vm256, %v235, 0
  %v294 = vsel %vm256, %v236, 0
  %v297 = vsel %vm256, %v237, 0
  %v300 = vsel %vm256, %v238, 0
  %v303 = vsel %vm256, %v239, 0
  %v306 = vsel %vm256, %v240, 0
  %v309 = vsel %vm256, %v241, 0
  %v312 = vsel %vm256, %v242, 0
  %v315 = vsel %vm256, %v243, 0
  %v318 = vsel %vm256, %v244, 0
  %v321 = vsel %vm256, %v245, 0
  %v324 = vsel %vm256, %v246, 0
  %v327 = vsel %vm256, %v247, 0
  %v330 = vsel %vm256, %v248, 0
  %v333 = vsel %vm256, %v249, 0
  %v336 = vsel %vm256, %v250, 0
  %v339 = vsel %vm256, %v251, 0
  %v342 = vsel %vm256, %v252, 0
  %v345 = vsel %vm256, %v253, 0
  %v348 = vsel %vm256, %v254, 0
  %v351 = vsel %vm256, %v255, 0
  %vm353 = vcmask 1041408
  %v355 = vsel %vm353, %v91, 0
  %357 = vmatpush.bf16.msra.mxu0 0
  %358 = vmatpush.bf16.msra.mxu0 0
  %359 = vmatpush.bf16.msra.mxu0 0
  %360 = vmatpush.bf16.msra.mxu0 0
  %361 = vmatpush.bf16.msra.mxu0 0
  %362 = vmatpush.bf16.msra.mxu0 0
  %363 = vmatpush.bf16.msra.mxu0 0
  %364 = vmatpush.bf16.msra.mxu0 %v355
  %365 = vmatmul.bf16.gmra.mxu0 %v258
  %v366 = vpop.f32.mrf.mxu0
  %v367 = vadd.f32 %v94, %v366
  %v368 = vpop.f32.mrf.mxu0
  %v369 = vadd.f32 %v94, %v368
  %370 = vmatmul.bf16.gmra.mxu0 %v261
  %v371 = vpop.f32.mrf.mxu0
  %v372 = vadd.f32 %v94, %v371
  %v373 = vpop.f32.mrf.mxu0
  %v374 = vadd.f32 %v94, %v373
  %375 = vmatmul.bf16.gmra.mxu0 %v264
  %v376 = vpop.f32.mrf.mxu0
  %v377 = vadd.f32 %v94, %v376
  %v378 = vpop.f32.mrf.mxu0
  %v379 = vadd.f32 %v94, %v378
  %380 = vmatmul.bf16.gmra.mxu0 %v267
  %v381 = vpop.f32.mrf.mxu0
  %v382 = vadd.f32 %v94, %v381
  %v383 = vpop.f32.mrf.mxu0
  %v384 = vadd.f32 %v94, %v383
  %385 = vmatmul.bf16.gmra.mxu0 %v270
  %v386 = vpop.f32.mrf.mxu0
  %v387 = vadd.f32 %v94, %v386
  %v388 = vpop.f32.mrf.mxu0
  %v389 = vadd.f32 %v94, %v388
  %390 = vmatmul.bf16.gmra.mxu0 %v273
  %v391 = vpop.f32.mrf.mxu0
  %v392 = vadd.f32 %v94, %v391
  %v393 = vpop.f32.mrf.mxu0
  %v394 = vadd.f32 %v94, %v393
  %395 = vmatmul.bf16.gmra.mxu0 %v276
  %v396 = vpop.f32.mrf.mxu0
  %v397 = vadd.f32 %v94, %v396
  %v398 = vpop.f32.mrf.mxu0
  %v399 = vadd.f32 %v94, %v398
  %400 = vmatmul.bf16.gmra.mxu0 %v279
  %v401 = vpop.f32.mrf.mxu0
  %v402 = vadd.f32 %v94, %v401
  %v403 = vpop.f32.mrf.mxu0
  %v404 = vadd.f32 %v94, %v403
  %405 = vmatmul.bf16.gmra.mxu0 %v282
  %v406 = vpop.f32.mrf.mxu0
  %v407 = vadd.f32 %v94, %v406
  %v408 = vpop.f32.mrf.mxu0
  %v409 = vadd.f32 %v94, %v408
  %410 = vmatmul.bf16.gmra.mxu0 %v285
  %v411 = vpop.f32.mrf.mxu0
  %v412 = vadd.f32 %v94, %v411
  %v413 = vpop.f32.mrf.mxu0
  %v414 = vadd.f32 %v94, %v413
  %415 = vmatmul.bf16.gmra.mxu0 %v288
  %v416 = vpop.f32.mrf.mxu0
  %v417 = vadd.f32 %v94, %v416
  %v418 = vpop.f32.mrf.mxu0
  %v419 = vadd.f32 %v94, %v418
  %420 = vmatmul.bf16.gmra.mxu0 %v291
  %v421 = vpop.f32.mrf.mxu0
  %v422 = vadd.f32 %v94, %v421
  %v423 = vpop.f32.mrf.mxu0
  %v424 = vadd.f32 %v94, %v423
  %425 = vmatmul.bf16.gmra.mxu0 %v294
  %v426 = vpop.f32.mrf.mxu0
  %v427 = vadd.f32 %v94, %v426
  %v428 = vpop.f32.mrf.mxu0
  %v429 = vadd.f32 %v94, %v428
  %430 = vmatmul.bf16.gmra.mxu0 %v297
  %v431 = vpop.f32.mrf.mxu0
  %v432 = vadd.f32 %v94, %v431
  %v433 = vpop.f32.mrf.mxu0
  %v434 = vadd.f32 %v94, %v433
  %435 = vmatmul.bf16.gmra.mxu0 %v300
  %v436 = vpop.f32.mrf.mxu0
  %v437 = vadd.f32 %v94, %v436
  %v438 = vpop.f32.mrf.mxu0
  %v439 = vadd.f32 %v94, %v438
  %440 = vmatmul.bf16.gmra.mxu0 %v303
  %v441 = vpop.f32.mrf.mxu0
  %v442 = vadd.f32 %v94, %v441
  %v443 = vpop.f32.mrf.mxu0
  %v444 = vadd.f32 %v94, %v443
  %445 = vmatmul.bf16.gmra.mxu0 %v306
  %v446 = vpop.f32.mrf.mxu0
  %v447 = vadd.f32 %v94, %v446
  %v448 = vpop.f32.mrf.mxu0
  %v449 = vadd.f32 %v94, %v448
  %450 = vmatmul.bf16.gmra.mxu0 %v309
  %v451 = vpop.f32.mrf.mxu0
  %v452 = vadd.f32 %v94, %v451
  %v453 = vpop.f32.mrf.mxu0
  %v454 = vadd.f32 %v94, %v453
  %455 = vmatmul.bf16.gmra.mxu0 %v312
  %v456 = vpop.f32.mrf.mxu0
  %v457 = vadd.f32 %v94, %v456
  %v458 = vpop.f32.mrf.mxu0
  %v459 = vadd.f32 %v94, %v458
  %460 = vmatmul.bf16.gmra.mxu0 %v315
  %v461 = vpop.f32.mrf.mxu0
  %v462 = vadd.f32 %v94, %v461
  %v463 = vpop.f32.mrf.mxu0
  %v464 = vadd.f32 %v94, %v463
  %465 = vmatmul.bf16.gmra.mxu0 %v318
  %v466 = vpop.f32.mrf.mxu0
  %v467 = vadd.f32 %v94, %v466
  %v468 = vpop.f32.mrf.mxu0
  %v469 = vadd.f32 %v94, %v468
  %470 = vmatmul.bf16.gmra.mxu0 %v321
  %v471 = vpop.f32.mrf.mxu0
  %v472 = vadd.f32 %v94, %v471
  %v473 = vpop.f32.mrf.mxu0
  %v474 = vadd.f32 %v94, %v473
  %475 = vmatmul.bf16.gmra.mxu0 %v324
  %v476 = vpop.f32.mrf.mxu0
  %v477 = vadd.f32 %v94, %v476
  %v478 = vpop.f32.mrf.mxu0
  %v479 = vadd.f32 %v94, %v478
  %480 = vmatmul.bf16.gmra.mxu0 %v327
  %v481 = vpop.f32.mrf.mxu0
  %v482 = vadd.f32 %v94, %v481
  %v483 = vpop.f32.mrf.mxu0
  %v484 = vadd.f32 %v94, %v483
  %485 = vmatmul.bf16.gmra.mxu0 %v330
  %v486 = vpop.f32.mrf.mxu0
  %v487 = vadd.f32 %v94, %v486
  %v488 = vpop.f32.mrf.mxu0
  %v489 = vadd.f32 %v94, %v488
  %490 = vmatmul.bf16.gmra.mxu0 %v333
  %v491 = vpop.f32.mrf.mxu0
  %v492 = vadd.f32 %v94, %v491
  %v493 = vpop.f32.mrf.mxu0
  %v494 = vadd.f32 %v94, %v493
  %495 = vmatmul.bf16.gmra.mxu0 %v336
  %v496 = vpop.f32.mrf.mxu0
  %v497 = vadd.f32 %v94, %v496
  %v498 = vpop.f32.mrf.mxu0
  %v499 = vadd.f32 %v94, %v498
  %500 = vmatmul.bf16.gmra.mxu0 %v339
  %v501 = vpop.f32.mrf.mxu0
  %v502 = vadd.f32 %v94, %v501
  %v503 = vpop.f32.mrf.mxu0
  %v504 = vadd.f32 %v94, %v503
  %505 = vmatmul.bf16.gmra.mxu0 %v342
  %v506 = vpop.f32.mrf.mxu0
  %v507 = vadd.f32 %v94, %v506
  %v508 = vpop.f32.mrf.mxu0
  %v509 = vadd.f32 %v94, %v508
  %510 = vmatmul.bf16.gmra.mxu0 %v345
  %v511 = vpop.f32.mrf.mxu0
  %v512 = vadd.f32 %v94, %v511
  %v513 = vpop.f32.mrf.mxu0
  %v514 = vadd.f32 %v94, %v513
  %515 = vmatmul.bf16.gmra.mxu0 %v348
  %v516 = vpop.f32.mrf.mxu0
  %v517 = vadd.f32 %v94, %v516
  %v518 = vpop.f32.mrf.mxu0
  %v519 = vadd.f32 %v94, %v518
  %520 = vmatmul.bf16.gmra.mxu0 %v351
  %v521 = vpop.f32.mrf.mxu0
  %v522 = vadd.f32 %v94, %v521
  %v523 = vpop.f32.mrf.mxu0
  %v524 = vadd.f32 %v94, %v523
  %525 = vdwg.mxu0
  %v526 = vmax.f32 %v367, 0.0
  %v527 = vmax.f32 %v369, 0.0
  %v528 = vmax.f32 %v372, 0.0
  %v529 = vmax.f32 %v374, 0.0
  %v530 = vmax.f32 %v377, 0.0
  %v531 = vmax.f32 %v379, 0.0
  %v532 = vmax.f32 %v382, 0.0
  %v533 = vmax.f32 %v384, 0.0
  %v534 = vmax.f32 %v387, 0.0
  %v535 = vmax.f32 %v389, 0.0
  %v536 = vmax.f32 %v392, 0.0
  %v537 = vmax.f32 %v394, 0.0
  %v538 = vmax.f32 %v397, 0.0
  %v539 = vmax.f32 %v399, 0.0
  %v540 = vmax.f32 %v402, 0.0
  %v541 = vmax.f32 %v404, 0.0
  %v542 = vmax.f32 %v407, 0.0
  %v543 = vmax.f32 %v409, 0.0
  %v544 = vmax.f32 %v412, 0.0
  %v545 = vmax.f32 %v414, 0.0
  %v546 = vmax.f32 %v417, 0.0
  %v547 = vmax.f32 %v419, 0.0
  %v548 = vmax.f32 %v422, 0.0
  %v549 = vmax.f32 %v424, 0.0
  %v550 = vmax.f32 %v427, 0.0
  %v551 = vmax.f32 %v429, 0.0
  %v552 = vmax.f32 %v432, 0.0
  %v553 = vmax.f32 %v434, 0.0
  %v554 = vmax.f32 %v437, 0.0
  %v555 = vmax.f32 %v439, 0.0
  %v556 = vmax.f32 %v442, 0.0
  %v557 = vmax.f32 %v444, 0.0
  %v558 = vmax.f32 %v447, 0.0
  %v559 = vmax.f32 %v449, 0.0
  %v560 = vmax.f32 %v452, 0.0
  %v561 = vmax.f32 %v454, 0.0
  %v562 = vmax.f32 %v457, 0.0
  %v563 = vmax.f32 %v459, 0.0
  %v564 = vmax.f32 %v462, 0.0
  %v565 = vmax.f32 %v464, 0.0
  %v566 = vmax.f32 %v467, 0.0
  %v567 = vmax.f32 %v469, 0.0
  %v568 = vmax.f32 %v472, 0.0
  %v569 = vmax.f32 %v474, 0.0
  %v570 = vmax.f32 %v477, 0.0
  %v571 = vmax.f32 %v479, 0.0
  %v572 = vmax.f32 %v482, 0.0
  %v573 = vmax.f32 %v484, 0.0
  %v574 = vmax.f32 %v487, 0.0
  %v575 = vmax.f32 %v489, 0.0
  %v576 = vmax.f32 %v492, 0.0
  %v577 = vmax.f32 %v494, 0.0
  %v578 = vmax.f32 %v497, 0.0
  %v579 = vmax.f32 %v499, 0.0
  %v580 = vmax.f32 %v502, 0.0
  %v581 = vmax.f32 %v504, 0.0
  %v582 = vmax.f32 %v507, 0.0
  %v583 = vmax.f32 %v509, 0.0
  %v584 = vmax.f32 %v512, 0.0
  %v585 = vmax.f32 %v514, 0.0
  %v586 = vmax.f32 %v517, 0.0
  %v587 = vmax.f32 %v519, 0.0
  %v588 = vmax.f32 %v522, 0.0
  %v589 = vmax.f32 %v524, 0.0
  %v590 = vpack.c.bf16 %v527, %v526
  %v591 = vpack.c.bf16 %v529, %v528
  %v592 = vpack.c.bf16 %v531, %v530
  %v593 = vpack.c.bf16 %v533, %v532
  %v594 = vpack.c.bf16 %v535, %v534
  %v595 = vpack.c.bf16 %v537, %v536
  %v596 = vpack.c.bf16 %v539, %v538
  %v597 = vpack.c.bf16 %v541, %v540
  %v598 = vpack.c.bf16 %v543, %v542
  %v599 = vpack.c.bf16 %v545, %v544
  %v600 = vpack.c.bf16 %v547, %v546
  %v601 = vpack.c.bf16 %v549, %v548
  %v602 = vpack.c.bf16 %v551, %v550
  %v603 = vpack.c.bf16 %v553, %v552
  %v604 = vpack.c.bf16 %v555, %v554
  %v605 = vpack.c.bf16 %v557, %v556
  %v606 = vpack.c.bf16 %v559, %v558
  %v607 = vpack.c.bf16 %v561, %v560
  %v608 = vpack.c.bf16 %v563, %v562
  %v609 = vpack.c.bf16 %v565, %v564
  %v610 = vpack.c.bf16 %v567, %v566
  %v611 = vpack.c.bf16 %v569, %v568
  %v612 = vpack.c.bf16 %v571, %v570
  %v613 = vpack.c.bf16 %v573, %v572
  %v614 = vpack.c.bf16 %v575, %v574
  %v615 = vpack.c.bf16 %v577, %v576
  %v616 = vpack.c.bf16 %v579, %v578
  %v617 = vpack.c.bf16 %v581, %v580
  %v618 = vpack.c.bf16 %v583, %v582
  %v619 = vpack.c.bf16 %v585, %v584
  %v620 = vpack.c.bf16 %v587, %v586
  %v621 = vpack.c.bf16 %v589, %v588
  %v622 = vld [vmem:[%s3] sm:$0xf]
  %v623 = vld [vmem:[%s3 + $0x4] sm:$0xf]
  %v624 = vld [vmem:[%s3 + $0x8] sm:$0xf]
  %v625 = vld [vmem:[%s3 + $0xc] sm:$0xf]
  %v626 = vld [vmem:[%s3 + $0x10] sm:$0xf]
  %v627 = vld [vmem:[%s3 + $0x14] sm:$0xf]
  %v628 = vld [vmem:[%s3 + $0x18] sm:$0xf]
  %v629 = vld [vmem:[%s3 + $0x1c] sm:$0xf]
  %v630 = vld [vmem:[%s3 + $0x20] sm:$0xf]
  %v631 = vld [vmem:[%s3 + $0x24] sm:$0xf]
  %v632 = vld [vmem:[%s3 + $0x28] sm:$0xf]
  %v633 = vld [vmem:[%s3 + $0x2c] sm:$0xf]
  %v634 = vld [vmem:[%s3 + $0x30] sm:$0xf]
  %v635 = vld [vmem:[%s3 + $0x34] sm:$0xf]
  %v636 = vld [vmem:[%s3 + $0x38] sm:$0xf]
  %v637 = vld [vmem:[%s3 + $0x3c] sm:$0xf]
  %v638 = vld [vmem:[%s4] sm:$0x1]
  %v640 = vperm.slane %v638, 0
  %v658 = vunpack.c.l.b16 %v622
  %v659 = vunpack.c.l.b16 %v623
  %v660 = vunpack.c.l.b16 %v624
  %v661 = vunpack.c.l.b16 %v625
  %v662 = vunpack.c.l.b16 %v626
  %v663 = vunpack.c.l.b16 %v627
  %v664 = vunpack.c.l.b16 %v628
  %v665 = vunpack.c.l.b16 %v629
  %v666 = vunpack.c.l.b16 %v630
  %v667 = vunpack.c.l.b16 %v631
  %v668 = vunpack.c.l.b16 %v632
  %v669 = vunpack.c.l.b16 %v633
  %v670 = vunpack.c.l.b16 %v634
  %v671 = vunpack.c.l.b16 %v635
  %v672 = vunpack.c.l.b16 %v636
  %v673 = vunpack.c.l.b16 %v637
  %v674 = vpack.c.b16 %v659, %v658
  %v675 = vpack.c.b16 %v661, %v660
  %v676 = vpack.c.b16 %v663, %v662
  %v677 = vpack.c.b16 %v665, %v664
  %v678 = vpack.c.b16 %v667, %v666
  %v679 = vpack.c.b16 %v669, %v668
  %v680 = vpack.c.b16 %v671, %v670
  %v681 = vpack.c.b16 %v673, %v672
  %690 = vmatpush.bf16.msra.mxu0 %v681
  %691 = vmatpush.bf16.msra.mxu0 %v680
  %692 = vmatpush.bf16.msra.mxu0 %v679
  %693 = vmatpush.bf16.msra.mxu0 %v678
  %694 = vmatpush.bf16.msra.mxu0 %v677
  %695 = vmatpush.bf16.msra.mxu0 %v676
  %696 = vmatpush.bf16.msra.mxu0 %v675
  %697 = vmatpush.bf16.msra.mxu0 %v674
  %698 = vmatmul.bf16.gmra.mxu0 %v590
  %v699 = vpop.f32.mrf.mxu0
  %v700 = vadd.f32 %v640, %v699
  %v701 = vpop.f32.mrf.mxu0
  %v702 = vadd.f32 %v640, %v701
  %703 = vmatmul.bf16.gmra.mxu0 %v591
  %v704 = vpop.f32.mrf.mxu0
  %v705 = vadd.f32 %v640, %v704
  %v706 = vpop.f32.mrf.mxu0
  %v707 = vadd.f32 %v640, %v706
  %708 = vmatmul.bf16.gmra.mxu0 %v592
  %v709 = vpop.f32.mrf.mxu0
  %v710 = vadd.f32 %v640, %v709
  %v711 = vpop.f32.mrf.mxu0
  %v712 = vadd.f32 %v640, %v711
  %713 = vmatmul.bf16.gmra.mxu0 %v593
  %v714 = vpop.f32.mrf.mxu0
  %v715 = vadd.f32 %v640, %v714
  %v716 = vpop.f32.mrf.mxu0
  %v717 = vadd.f32 %v640, %v716
  %718 = vmatmul.bf16.gmra.mxu0 %v594
  %v719 = vpop.f32.mrf.mxu0
  %v720 = vadd.f32 %v640, %v719
  %v721 = vpop.f32.mrf.mxu0
  %v722 = vadd.f32 %v640, %v721
  %723 = vmatmul.bf16.gmra.mxu0 %v595
  %v724 = vpop.f32.mrf.mxu0
  %v725 = vadd.f32 %v640, %v724
  %v726 = vpop.f32.mrf.mxu0
  %v727 = vadd.f32 %v640, %v726
  %728 = vmatmul.bf16.gmra.mxu0 %v596
  %v729 = vpop.f32.mrf.mxu0
  %v730 = vadd.f32 %v640, %v729
  %v731 = vpop.f32.mrf.mxu0
  %v732 = vadd.f32 %v640, %v731
  %733 = vmatmul.bf16.gmra.mxu0 %v597
  %v734 = vpop.f32.mrf.mxu0
  %v735 = vadd.f32 %v640, %v734
  %v736 = vpop.f32.mrf.mxu0
  %v737 = vadd.f32 %v640, %v736
  %738 = vmatmul.bf16.gmra.mxu0 %v598
  %v739 = vpop.f32.mrf.mxu0
  %v740 = vadd.f32 %v640, %v739
  %v741 = vpop.f32.mrf.mxu0
  %v742 = vadd.f32 %v640, %v741
  %743 = vmatmul.bf16.gmra.mxu0 %v599
  %v744 = vpop.f32.mrf.mxu0
  %v745 = vadd.f32 %v640, %v744
  %v746 = vpop.f32.mrf.mxu0
  %v747 = vadd.f32 %v640, %v746
  %748 = vmatmul.bf16.gmra.mxu0 %v600
  %v749 = vpop.f32.mrf.mxu0
  %v750 = vadd.f32 %v640, %v749
  %v751 = vpop.f32.mrf.mxu0
  %v752 = vadd.f32 %v640, %v751
  %753 = vmatmul.bf16.gmra.mxu0 %v601
  %v754 = vpop.f32.mrf.mxu0
  %v755 = vadd.f32 %v640, %v754
  %v756 = vpop.f32.mrf.mxu0
  %v757 = vadd.f32 %v640, %v756
  %758 = vmatmul.bf16.gmra.mxu0 %v602
  %v759 = vpop.f32.mrf.mxu0
  %v760 = vadd.f32 %v640, %v759
  %v761 = vpop.f32.mrf.mxu0
  %v762 = vadd.f32 %v640, %v761
  %763 = vmatmul.bf16.gmra.mxu0 %v603
  %v764 = vpop.f32.mrf.mxu0
  %v765 = vadd.f32 %v640, %v764
  %v766 = vpop.f32.mrf.mxu0
  %v767 = vadd.f32 %v640, %v766
  %768 = vmatmul.bf16.gmra.mxu0 %v604
  %v769 = vpop.f32.mrf.mxu0
  %v770 = vadd.f32 %v640, %v769
  %v771 = vpop.f32.mrf.mxu0
  %v772 = vadd.f32 %v640, %v771
  %773 = vmatmul.bf16.gmra.mxu0 %v605
  %v774 = vpop.f32.mrf.mxu0
  %v775 = vadd.f32 %v640, %v774
  %v776 = vpop.f32.mrf.mxu0
  %v777 = vadd.f32 %v640, %v776
  %778 = vmatmul.bf16.gmra.mxu0 %v606
  %v779 = vpop.f32.mrf.mxu0
  %v780 = vadd.f32 %v640, %v779
  %v781 = vpop.f32.mrf.mxu0
  %v782 = vadd.f32 %v640, %v781
  %783 = vmatmul.bf16.gmra.mxu0 %v607
  %v784 = vpop.f32.mrf.mxu0
  %v785 = vadd.f32 %v640, %v784
  %v786 = vpop.f32.mrf.mxu0
  %v787 = vadd.f32 %v640, %v786
  %788 = vmatmul.bf16.gmra.mxu0 %v608
  %v789 = vpop.f32.mrf.mxu0
  %v790 = vadd.f32 %v640, %v789
  %v791 = vpop.f32.mrf.mxu0
  %v792 = vadd.f32 %v640, %v791
  %793 = vmatmul.bf16.gmra.mxu0 %v609
  %v794 = vpop.f32.mrf.mxu0
  %v795 = vadd.f32 %v640, %v794
  %v796 = vpop.f32.mrf.mxu0
  %v797 = vadd.f32 %v640, %v796
  %798 = vmatmul.bf16.gmra.mxu0 %v610
  %v799 = vpop.f32.mrf.mxu0
  %v800 = vadd.f32 %v640, %v799
  %v801 = vpop.f32.mrf.mxu0
  %v802 = vadd.f32 %v640, %v801
  %803 = vmatmul.bf16.gmra.mxu0 %v611
  %v804 = vpop.f32.mrf.mxu0
  %v805 = vadd.f32 %v640, %v804
  %v806 = vpop.f32.mrf.mxu0
  %v807 = vadd.f32 %v640, %v806
  %808 = vmatmul.bf16.gmra.mxu0 %v612
  %v809 = vpop.f32.mrf.mxu0
  %v810 = vadd.f32 %v640, %v809
  %v811 = vpop.f32.mrf.mxu0
  %v812 = vadd.f32 %v640, %v811
  %813 = vmatmul.bf16.gmra.mxu0 %v613
  %v814 = vpop.f32.mrf.mxu0
  %v815 = vadd.f32 %v640, %v814
  %v816 = vpop.f32.mrf.mxu0
  %v817 = vadd.f32 %v640, %v816
  %818 = vmatmul.bf16.gmra.mxu0 %v614
  %v819 = vpop.f32.mrf.mxu0
  %v820 = vadd.f32 %v640, %v819
  %v821 = vpop.f32.mrf.mxu0
  %v822 = vadd.f32 %v640, %v821
  %823 = vmatmul.bf16.gmra.mxu0 %v615
  %v824 = vpop.f32.mrf.mxu0
  %v825 = vadd.f32 %v640, %v824
  %v826 = vpop.f32.mrf.mxu0
  %v827 = vadd.f32 %v640, %v826
  %828 = vmatmul.bf16.gmra.mxu0 %v616
  %v829 = vpop.f32.mrf.mxu0
  %v830 = vadd.f32 %v640, %v829
  %v831 = vpop.f32.mrf.mxu0
  %v832 = vadd.f32 %v640, %v831
  %833 = vmatmul.bf16.gmra.mxu0 %v617
  %v834 = vpop.f32.mrf.mxu0
  %v835 = vadd.f32 %v640, %v834
  %v836 = vpop.f32.mrf.mxu0
  %v837 = vadd.f32 %v640, %v836
  %838 = vmatmul.bf16.gmra.mxu0 %v618
  %v839 = vpop.f32.mrf.mxu0
  %v840 = vadd.f32 %v640, %v839
  %v841 = vpop.f32.mrf.mxu0
  %v842 = vadd.f32 %v640, %v841
  %843 = vmatmul.bf16.gmra.mxu0 %v619
  %v844 = vpop.f32.mrf.mxu0
  %v845 = vadd.f32 %v640, %v844
  %v846 = vpop.f32.mrf.mxu0
  %v847 = vadd.f32 %v640, %v846
  %848 = vmatmul.bf16.gmra.mxu0 %v620
  %v849 = vpop.f32.mrf.mxu0
  %v850 = vadd.f32 %v640, %v849
  %v851 = vpop.f32.mrf.mxu0
  %v852 = vadd.f32 %v640, %v851
  %853 = vmatmul.bf16.gmra.mxu0 %v621
  %v854 = vpop.f32.mrf.mxu0
  %v855 = vadd.f32 %v640, %v854
  %v856 = vpop.f32.mrf.mxu0
  %v857 = vadd.f32 %v640, %v856
  %858 = vdwg.mxu0
  %v859 = vmax.f32 %v700, 0.0
  %v860 = vmax.f32 %v702, 0.0
  %v861 = vmax.f32 %v705, 0.0
  %v862 = vmax.f32 %v707, 0.0
  %v863 = vmax.f32 %v710, 0.0
  %v864 = vmax.f32 %v712, 0.0
  %v865 = vmax.f32 %v715, 0.0
  %v866 = vmax.f32 %v717, 0.0
  %v867 = vmax.f32 %v720, 0.0
  %v868 = vmax.f32 %v722, 0.0
  %v869 = vmax.f32 %v725, 0.0
  %v870 = vmax.f32 %v727, 0.0
  %v871 = vmax.f32 %v730, 0.0
  %v872 = vmax.f32 %v732, 0.0
  %v873 = vmax.f32 %v735, 0.0
  %v874 = vmax.f32 %v737, 0.0
  %v875 = vmax.f32 %v740, 0.0
  %v876 = vmax.f32 %v742, 0.0
  %v877 = vmax.f32 %v745, 0.0
  %v878 = vmax.f32 %v747, 0.0
  %v879 = vmax.f32 %v750, 0.0
  %v880 = vmax.f32 %v752, 0.0
  %v881 = vmax.f32 %v755, 0.0
  %v882 = vmax.f32 %v757, 0.0
  %v883 = vmax.f32 %v760, 0.0
  %v884 = vmax.f32 %v762, 0.0
  %v885 = vmax.f32 %v765, 0.0
  %v886 = vmax.f32 %v767, 0.0
  %v887 = vmax.f32 %v770, 0.0
  %v888 = vmax.f32 %v772, 0.0
  %v889 = vmax.f32 %v775, 0.0
  %v890 = vmax.f32 %v777, 0.0
  %v891 = vmax.f32 %v780, 0.0
  %v892 = vmax.f32 %v782, 0.0
  %v893 = vmax.f32 %v785, 0.0
  %v894 = vmax.f32 %v787, 0.0
  %v895 = vmax.f32 %v790, 0.0
  %v896 = vmax.f32 %v792, 0.0
  %v897 = vmax.f32 %v795, 0.0
  %v898 = vmax.f32 %v797, 0.0
  %v899 = vmax.f32 %v800, 0.0
  %v900 = vmax.f32 %v802, 0.0
  %v901 = vmax.f32 %v805, 0.0
  %v902 = vmax.f32 %v807, 0.0
  %v903 = vmax.f32 %v810, 0.0
  %v904 = vmax.f32 %v812, 0.0
  %v905 = vmax.f32 %v815, 0.0
  %v906 = vmax.f32 %v817, 0.0
  %v907 = vmax.f32 %v820, 0.0
  %v908 = vmax.f32 %v822, 0.0
  %v909 = vmax.f32 %v825, 0.0
  %v910 = vmax.f32 %v827, 0.0
  %v911 = vmax.f32 %v830, 0.0
  %v912 = vmax.f32 %v832, 0.0
  %v913 = vmax.f32 %v835, 0.0
  %v914 = vmax.f32 %v837, 0.0
  %v915 = vmax.f32 %v840, 0.0
  %v916 = vmax.f32 %v842, 0.0
  %v917 = vmax.f32 %v845, 0.0
  %v918 = vmax.f32 %v847, 0.0
  %v919 = vmax.f32 %v850, 0.0
  %v920 = vmax.f32 %v852, 0.0
  %v921 = vmax.f32 %v855, 0.0
  %v922 = vmax.f32 %v857, 0.0
  %v923 = vpack.c.bf16 %v860, %v859
  %v924 = vpack.c.bf16 %v862, %v861
  %v925 = vpack.c.bf16 %v864, %v863
  %v926 = vpack.c.bf16 %v866, %v865
  %v927 = vpack.c.bf16 %v868, %v867
  %v928 = vpack.c.bf16 %v870, %v869
  %v929 = vpack.c.bf16 %v872, %v871
  %v930 = vpack.c.bf16 %v874, %v873
  %v931 = vpack.c.bf16 %v876, %v875
  %v932 = vpack.c.bf16 %v878, %v877
  %v933 = vpack.c.bf16 %v880, %v879
  %v934 = vpack.c.bf16 %v882, %v881
  %v935 = vpack.c.bf16 %v884, %v883
  %v936 = vpack.c.bf16 %v886, %v885
  %v937 = vpack.c.bf16 %v888, %v887
  %v938 = vpack.c.bf16 %v890, %v889
  %v939 = vpack.c.bf16 %v892, %v891
  %v940 = vpack.c.bf16 %v894, %v893
  %v941 = vpack.c.bf16 %v896, %v895
  %v942 = vpack.c.bf16 %v898, %v897
  %v943 = vpack.c.bf16 %v900, %v899
  %v944 = vpack.c.bf16 %v902, %v901
  %v945 = vpack.c.bf16 %v904, %v903
  %v946 = vpack.c.bf16 %v906, %v905
  %v947 = vpack.c.bf16 %v908, %v907
  %v948 = vpack.c.bf16 %v910, %v909
  %v949 = vpack.c.bf16 %v912, %v911
  %v950 = vpack.c.bf16 %v914, %v913
  %v951 = vpack.c.bf16 %v916, %v915
  %v952 = vpack.c.bf16 %v918, %v917
  %v953 = vpack.c.bf16 %v920, %v919
  %v954 = vpack.c.bf16 %v922, %v921
  %s955 = scalar_lea.vmem %s3, 64
  %v956 = vld [vmem:[%s955] sm:$0xf]
  %v957 = vld [vmem:[%s955 + $0x4] sm:$0xf]
  %v958 = vld [vmem:[%s955 + $0x8] sm:$0xf]
  %v959 = vld [vmem:[%s955 + $0xc] sm:$0xf]
  %v960 = vld [vmem:[%s955 + $0x10] sm:$0xf]
  %v961 = vld [vmem:[%s955 + $0x14] sm:$0xf]
  %v962 = vld [vmem:[%s955 + $0x18] sm:$0xf]
  %v963 = vld [vmem:[%s955 + $0x1c] sm:$0xf]
  %v964 = vld [vmem:[%s955 + $0x20] sm:$0xf]
  %v965 = vld [vmem:[%s955 + $0x24] sm:$0xf]
  %v966 = vld [vmem:[%s955 + $0x28] sm:$0xf]
  %v967 = vld [vmem:[%s955 + $0x2c] sm:$0xf]
  %v968 = vld [vmem:[%s955 + $0x30] sm:$0xf]
  %v969 = vld [vmem:[%s955 + $0x34] sm:$0xf]
  %v970 = vld [vmem:[%s955 + $0x38] sm:$0xf]
  %v971 = vld [vmem:[%s955 + $0x3c] sm:$0xf]
  %s972 = scalar_lea.vmem %s4, 1
  %v973 = vld [vmem:[%s972] sm:$0x1]
  %v975 = vperm.slane %v973, 0
  %v993 = vunpack.c.l.b16 %v956
  %v994 = vunpack.c.l.b16 %v957
  %v995 = vunpack.c.l.b16 %v958
  %v996 = vunpack.c.l.b16 %v959
  %v997 = vunpack.c.l.b16 %v960
  %v998 = vunpack.c.l.b16 %v961
  %v999 = vunpack.c.l.b16 %v962
  %v1000 = vunpack.c.l.b16 %v963
  %v1001 = vunpack.c.l.b16 %v964
  %v1002 = vunpack.c.l.b16 %v965
  %v1003 = vunpack.c.l.b16 %v966
  %v1004 = vunpack.c.l.b16 %v967
  %v1005 = vunpack.c.l.b16 %v968
  %v1006 = vunpack.c.l.b16 %v969
  %v1007 = vunpack.c.l.b16 %v970
  %v1008 = vunpack.c.l.b16 %v971
  %v1009 = vpack.c.b16 %v994, %v993
  %v1010 = vpack.c.b16 %v996, %v995
  %v1011 = vpack.c.b16 %v998, %v997
  %v1012 = vpack.c.b16 %v1000, %v999
  %v1013 = vpack.c.b16 %v1002, %v1001
  %v1014 = vpack.c.b16 %v1004, %v1003
  %v1015 = vpack.c.b16 %v1006, %v1005
  %v1016 = vpack.c.b16 %v1008, %v1007
  %1025 = vmatpush.bf16.msra.mxu0 %v1016
  %1026 = vmatpush.bf16.msra.mxu0 %v1015
  %1027 = vmatpush.bf16.msra.mxu0 %v1014
  %1028 = vmatpush.bf16.msra.mxu0 %v1013
  %1029 = vmatpush.bf16.msra.mxu0 %v1012
  %1030 = vmatpush.bf16.msra.mxu0 %v1011
  %1031 = vmatpush.bf16.msra.mxu0 %v1010
  %1032 = vmatpush.bf16.msra.mxu0 %v1009
  %1033 = vmatmul.bf16.gmra.mxu0 %v923
  %v1034 = vpop.f32.mrf.mxu0
  %v1035 = vadd.f32 %v975, %v1034
  %v1036 = vpop.f32.mrf.mxu0
  %v1037 = vadd.f32 %v975, %v1036
  %1038 = vmatmul.bf16.gmra.mxu0 %v924
  %v1039 = vpop.f32.mrf.mxu0
  %v1040 = vadd.f32 %v975, %v1039
  %v1041 = vpop.f32.mrf.mxu0
  %v1042 = vadd.f32 %v975, %v1041
  %1043 = vmatmul.bf16.gmra.mxu0 %v925
  %v1044 = vpop.f32.mrf.mxu0
  %v1045 = vadd.f32 %v975, %v1044
  %v1046 = vpop.f32.mrf.mxu0
  %v1047 = vadd.f32 %v975, %v1046
  %1048 = vmatmul.bf16.gmra.mxu0 %v926
  %v1049 = vpop.f32.mrf.mxu0
  %v1050 = vadd.f32 %v975, %v1049
  %v1051 = vpop.f32.mrf.mxu0
  %v1052 = vadd.f32 %v975, %v1051
  %1053 = vmatmul.bf16.gmra.mxu0 %v927
  %v1054 = vpop.f32.mrf.mxu0
  %v1055 = vadd.f32 %v975, %v1054
  %v1056 = vpop.f32.mrf.mxu0
  %v1057 = vadd.f32 %v975, %v1056
  %1058 = vmatmul.bf16.gmra.mxu0 %v928
  %v1059 = vpop.f32.mrf.mxu0
  %v1060 = vadd.f32 %v975, %v1059
  %v1061 = vpop.f32.mrf.mxu0
  %v1062 = vadd.f32 %v975, %v1061
  %1063 = vmatmul.bf16.gmra.mxu0 %v929
  %v1064 = vpop.f32.mrf.mxu0
  %v1065 = vadd.f32 %v975, %v1064
  %v1066 = vpop.f32.mrf.mxu0
  %v1067 = vadd.f32 %v975, %v1066
  %1068 = vmatmul.bf16.gmra.mxu0 %v930
  %v1069 = vpop.f32.mrf.mxu0
  %v1070 = vadd.f32 %v975, %v1069
  %v1071 = vpop.f32.mrf.mxu0
  %v1072 = vadd.f32 %v975, %v1071
  %1073 = vmatmul.bf16.gmra.mxu0 %v931
  %v1074 = vpop.f32.mrf.mxu0
  %v1075 = vadd.f32 %v975, %v1074
  %v1076 = vpop.f32.mrf.mxu0
  %v1077 = vadd.f32 %v975, %v1076
  %1078 = vmatmul.bf16.gmra.mxu0 %v932
  %v1079 = vpop.f32.mrf.mxu0
  %v1080 = vadd.f32 %v975, %v1079
  %v1081 = vpop.f32.mrf.mxu0
  %v1082 = vadd.f32 %v975, %v1081
  %1083 = vmatmul.bf16.gmra.mxu0 %v933
  %v1084 = vpop.f32.mrf.mxu0
  %v1085 = vadd.f32 %v975, %v1084
  %v1086 = vpop.f32.mrf.mxu0
  %v1087 = vadd.f32 %v975, %v1086
  %1088 = vmatmul.bf16.gmra.mxu0 %v934
  %v1089 = vpop.f32.mrf.mxu0
  %v1090 = vadd.f32 %v975, %v1089
  %v1091 = vpop.f32.mrf.mxu0
  %v1092 = vadd.f32 %v975, %v1091
  %1093 = vmatmul.bf16.gmra.mxu0 %v935
  %v1094 = vpop.f32.mrf.mxu0
  %v1095 = vadd.f32 %v975, %v1094
  %v1096 = vpop.f32.mrf.mxu0
  %v1097 = vadd.f32 %v975, %v1096
  %1098 = vmatmul.bf16.gmra.mxu0 %v936
  %v1099 = vpop.f32.mrf.mxu0
  %v1100 = vadd.f32 %v975, %v1099
  %v1101 = vpop.f32.mrf.mxu0
  %v1102 = vadd.f32 %v975, %v1101
  %1103 = vmatmul.bf16.gmra.mxu0 %v937
  %v1104 = vpop.f32.mrf.mxu0
  %v1105 = vadd.f32 %v975, %v1104
  %v1106 = vpop.f32.mrf.mxu0
  %v1107 = vadd.f32 %v975, %v1106
  %1108 = vmatmul.bf16.gmra.mxu0 %v938
  %v1109 = vpop.f32.mrf.mxu0
  %v1110 = vadd.f32 %v975, %v1109
  %v1111 = vpop.f32.mrf.mxu0
  %v1112 = vadd.f32 %v975, %v1111
  %1113 = vmatmul.bf16.gmra.mxu0 %v939
  %v1114 = vpop.f32.mrf.mxu0
  %v1115 = vadd.f32 %v975, %v1114
  %v1116 = vpop.f32.mrf.mxu0
  %v1117 = vadd.f32 %v975, %v1116
  %1118 = vmatmul.bf16.gmra.mxu0 %v940
  %v1119 = vpop.f32.mrf.mxu0
  %v1120 = vadd.f32 %v975, %v1119
  %v1121 = vpop.f32.mrf.mxu0
  %v1122 = vadd.f32 %v975, %v1121
  %1123 = vmatmul.bf16.gmra.mxu0 %v941
  %v1124 = vpop.f32.mrf.mxu0
  %v1125 = vadd.f32 %v975, %v1124
  %v1126 = vpop.f32.mrf.mxu0
  %v1127 = vadd.f32 %v975, %v1126
  %1128 = vmatmul.bf16.gmra.mxu0 %v942
  %v1129 = vpop.f32.mrf.mxu0
  %v1130 = vadd.f32 %v975, %v1129
  %v1131 = vpop.f32.mrf.mxu0
  %v1132 = vadd.f32 %v975, %v1131
  %1133 = vmatmul.bf16.gmra.mxu0 %v943
  %v1134 = vpop.f32.mrf.mxu0
  %v1135 = vadd.f32 %v975, %v1134
  %v1136 = vpop.f32.mrf.mxu0
  %v1137 = vadd.f32 %v975, %v1136
  %1138 = vmatmul.bf16.gmra.mxu0 %v944
  %v1139 = vpop.f32.mrf.mxu0
  %v1140 = vadd.f32 %v975, %v1139
  %v1141 = vpop.f32.mrf.mxu0
  %v1142 = vadd.f32 %v975, %v1141
  %1143 = vmatmul.bf16.gmra.mxu0 %v945
  %v1144 = vpop.f32.mrf.mxu0
  %v1145 = vadd.f32 %v975, %v1144
  %v1146 = vpop.f32.mrf.mxu0
  %v1147 = vadd.f32 %v975, %v1146
  %1148 = vmatmul.bf16.gmra.mxu0 %v946
  %v1149 = vpop.f32.mrf.mxu0
  %v1150 = vadd.f32 %v975, %v1149
  %v1151 = vpop.f32.mrf.mxu0
  %v1152 = vadd.f32 %v975, %v1151
  %1153 = vmatmul.bf16.gmra.mxu0 %v947
  %v1154 = vpop.f32.mrf.mxu0
  %v1155 = vadd.f32 %v975, %v1154
  %v1156 = vpop.f32.mrf.mxu0
  %v1157 = vadd.f32 %v975, %v1156
  %1158 = vmatmul.bf16.gmra.mxu0 %v948
  %v1159 = vpop.f32.mrf.mxu0
  %v1160 = vadd.f32 %v975, %v1159
  %v1161 = vpop.f32.mrf.mxu0
  %v1162 = vadd.f32 %v975, %v1161
  %1163 = vmatmul.bf16.gmra.mxu0 %v949
  %v1164 = vpop.f32.mrf.mxu0
  %v1165 = vadd.f32 %v975, %v1164
  %v1166 = vpop.f32.mrf.mxu0
  %v1167 = vadd.f32 %v975, %v1166
  %1168 = vmatmul.bf16.gmra.mxu0 %v950
  %v1169 = vpop.f32.mrf.mxu0
  %v1170 = vadd.f32 %v975, %v1169
  %v1171 = vpop.f32.mrf.mxu0
  %v1172 = vadd.f32 %v975, %v1171
  %1173 = vmatmul.bf16.gmra.mxu0 %v951
  %v1174 = vpop.f32.mrf.mxu0
  %v1175 = vadd.f32 %v975, %v1174
  %v1176 = vpop.f32.mrf.mxu0
  %v1177 = vadd.f32 %v975, %v1176
  %1178 = vmatmul.bf16.gmra.mxu0 %v952
  %v1179 = vpop.f32.mrf.mxu0
  %v1180 = vadd.f32 %v975, %v1179
  %v1181 = vpop.f32.mrf.mxu0
  %v1182 = vadd.f32 %v975, %v1181
  %1183 = vmatmul.bf16.gmra.mxu0 %v953
  %v1184 = vpop.f32.mrf.mxu0
  %v1185 = vadd.f32 %v975, %v1184
  %v1186 = vpop.f32.mrf.mxu0
  %v1187 = vadd.f32 %v975, %v1186
  %1188 = vmatmul.bf16.gmra.mxu0 %v954
  %v1189 = vpop.f32.mrf.mxu0
  %v1190 = vadd.f32 %v975, %v1189
  %v1191 = vpop.f32.mrf.mxu0
  %v1192 = vadd.f32 %v975, %v1191
  %1193 = vdwg.mxu0
  %v1194 = vmax.f32 %v1035, 0.0
  %v1195 = vmax.f32 %v1037, 0.0
  %v1196 = vmax.f32 %v1040, 0.0
  %v1197 = vmax.f32 %v1042, 0.0
  %v1198 = vmax.f32 %v1045, 0.0
  %v1199 = vmax.f32 %v1047, 0.0
  %v1200 = vmax.f32 %v1050, 0.0
  %v1201 = vmax.f32 %v1052, 0.0
  %v1202 = vmax.f32 %v1055, 0.0
  %v1203 = vmax.f32 %v1057, 0.0
  %v1204 = vmax.f32 %v1060, 0.0
  %v1205 = vmax.f32 %v1062, 0.0
  %v1206 = vmax.f32 %v1065, 0.0
  %v1207 = vmax.f32 %v1067, 0.0
  %v1208 = vmax.f32 %v1070, 0.0
  %v1209 = vmax.f32 %v1072, 0.0
  %v1210 = vmax.f32 %v1075, 0.0
  %v1211 = vmax.f32 %v1077, 0.0
  %v1212 = vmax.f32 %v1080, 0.0
  %v1213 = vmax.f32 %v1082, 0.0
  %v1214 = vmax.f32 %v1085, 0.0
  %v1215 = vmax.f32 %v1087, 0.0
  %v1216 = vmax.f32 %v1090, 0.0
  %v1217 = vmax.f32 %v1092, 0.0
  %v1218 = vmax.f32 %v1095, 0.0
  %v1219 = vmax.f32 %v1097, 0.0
  %v1220 = vmax.f32 %v1100, 0.0
  %v1221 = vmax.f32 %v1102, 0.0
  %v1222 = vmax.f32 %v1105, 0.0
  %v1223 = vmax.f32 %v1107, 0.0
  %v1224 = vmax.f32 %v1110, 0.0
  %v1225 = vmax.f32 %v1112, 0.0
  %v1226 = vmax.f32 %v1115, 0.0
  %v1227 = vmax.f32 %v1117, 0.0
  %v1228 = vmax.f32 %v1120, 0.0
  %v1229 = vmax.f32 %v1122, 0.0
  %v1230 = vmax.f32 %v1125, 0.0
  %v1231 = vmax.f32 %v1127, 0.0
  %v1232 = vmax.f32 %v1130, 0.0
  %v1233 = vmax.f32 %v1132, 0.0
  %v1234 = vmax.f32 %v1135, 0.0
  %v1235 = vmax.f32 %v1137, 0.0
  %v1236 = vmax.f32 %v1140, 0.0
  %v1237 = vmax.f32 %v1142, 0.0
  %v1238 = vmax.f32 %v1145, 0.0
  %v1239 = vmax.f32 %v1147, 0.0
  %v1240 = vmax.f32 %v1150, 0.0
  %v1241 = vmax.f32 %v1152, 0.0
  %v1242 = vmax.f32 %v1155, 0.0
  %v1243 = vmax.f32 %v1157, 0.0
  %v1244 = vmax.f32 %v1160, 0.0
  %v1245 = vmax.f32 %v1162, 0.0
  %v1246 = vmax.f32 %v1165, 0.0
  %v1247 = vmax.f32 %v1167, 0.0
  %v1248 = vmax.f32 %v1170, 0.0
  %v1249 = vmax.f32 %v1172, 0.0
  %v1250 = vmax.f32 %v1175, 0.0
  %v1251 = vmax.f32 %v1177, 0.0
  %v1252 = vmax.f32 %v1180, 0.0
  %v1253 = vmax.f32 %v1182, 0.0
  %v1254 = vmax.f32 %v1185, 0.0
  %v1255 = vmax.f32 %v1187, 0.0
  %v1256 = vmax.f32 %v1190, 0.0
  %v1257 = vmax.f32 %v1192, 0.0
  %v1258 = vpack.c.bf16 %v1195, %v1194
  %v1259 = vpack.c.bf16 %v1197, %v1196
  %v1260 = vpack.c.bf16 %v1199, %v1198
  %v1261 = vpack.c.bf16 %v1201, %v1200
  %v1262 = vpack.c.bf16 %v1203, %v1202
  %v1263 = vpack.c.bf16 %v1205, %v1204
  %v1264 = vpack.c.bf16 %v1207, %v1206
  %v1265 = vpack.c.bf16 %v1209, %v1208
  %v1266 = vpack.c.bf16 %v1211, %v1210
  %v1267 = vpack.c.bf16 %v1213, %v1212
  %v1268 = vpack.c.bf16 %v1215, %v1214
  %v1269 = vpack.c.bf16 %v1217, %v1216
  %v1270 = vpack.c.bf16 %v1219, %v1218
  %v1271 = vpack.c.bf16 %v1221, %v1220
  %v1272 = vpack.c.bf16 %v1223, %v1222
  %v1273 = vpack.c.bf16 %v1225, %v1224
  %v1274 = vpack.c.bf16 %v1227, %v1226
  %v1275 = vpack.c.bf16 %v1229, %v1228
  %v1276 = vpack.c.bf16 %v1231, %v1230
  %v1277 = vpack.c.bf16 %v1233, %v1232
  %v1278 = vpack.c.bf16 %v1235, %v1234
  %v1279 = vpack.c.bf16 %v1237, %v1236
  %v1280 = vpack.c.bf16 %v1239, %v1238
  %v1281 = vpack.c.bf16 %v1241, %v1240
  %v1282 = vpack.c.bf16 %v1243, %v1242
  %v1283 = vpack.c.bf16 %v1245, %v1244
  %v1284 = vpack.c.bf16 %v1247, %v1246
  %v1285 = vpack.c.bf16 %v1249, %v1248
  %v1286 = vpack.c.bf16 %v1251, %v1250
  %v1287 = vpack.c.bf16 %v1253, %v1252
  %v1288 = vpack.c.bf16 %v1255, %v1254
  %v1289 = vpack.c.bf16 %v1257, %v1256
  %s1290 = scalar_lea.vmem %s3, 128
  %v1291 = vld [vmem:[%s1290] sm:$0xf]
  %v1292 = vld [vmem:[%s1290 + $0x4] sm:$0xf]
  %v1293 = vld [vmem:[%s1290 + $0x8] sm:$0xf]
  %v1294 = vld [vmem:[%s1290 + $0xc] sm:$0xf]
  %v1295 = vld [vmem:[%s1290 + $0x10] sm:$0xf]
  %v1296 = vld [vmem:[%s1290 + $0x14] sm:$0xf]
  %v1297 = vld [vmem:[%s1290 + $0x18] sm:$0xf]
  %v1298 = vld [vmem:[%s1290 + $0x1c] sm:$0xf]
  %v1299 = vld [vmem:[%s1290 + $0x20] sm:$0xf]
  %v1300 = vld [vmem:[%s1290 + $0x24] sm:$0xf]
  %v1301 = vld [vmem:[%s1290 + $0x28] sm:$0xf]
  %v1302 = vld [vmem:[%s1290 + $0x2c] sm:$0xf]
  %v1303 = vld [vmem:[%s1290 + $0x30] sm:$0xf]
  %v1304 = vld [vmem:[%s1290 + $0x34] sm:$0xf]
  %v1305 = vld [vmem:[%s1290 + $0x38] sm:$0xf]
  %v1306 = vld [vmem:[%s1290 + $0x3c] sm:$0xf]
  %s1307 = scalar_lea.vmem %s4, 2
  %v1308 = vld [vmem:[%s1307] sm:$0x1]
  %v1310 = vperm.slane %v1308, 0
  %v1328 = vunpack.c.l.b16 %v1291
  %v1329 = vunpack.c.l.b16 %v1292
  %v1330 = vunpack.c.l.b16 %v1293
  %v1331 = vunpack.c.l.b16 %v1294
  %v1332 = vunpack.c.l.b16 %v1295
  %v1333 = vunpack.c.l.b16 %v1296
  %v1334 = vunpack.c.l.b16 %v1297
  %v1335 = vunpack.c.l.b16 %v1298
  %v1336 = vunpack.c.l.b16 %v1299
  %v1337 = vunpack.c.l.b16 %v1300
  %v1338 = vunpack.c.l.b16 %v1301
  %v1339 = vunpack.c.l.b16 %v1302
  %v1340 = vunpack.c.l.b16 %v1303
  %v1341 = vunpack.c.l.b16 %v1304
  %v1342 = vunpack.c.l.b16 %v1305
  %v1343 = vunpack.c.l.b16 %v1306
  %v1344 = vpack.c.b16 %v1329, %v1328
  %v1345 = vpack.c.b16 %v1331, %v1330
  %v1346 = vpack.c.b16 %v1333, %v1332
  %v1347 = vpack.c.b16 %v1335, %v1334
  %v1348 = vpack.c.b16 %v1337, %v1336
  %v1349 = vpack.c.b16 %v1339, %v1338
  %v1350 = vpack.c.b16 %v1341, %v1340
  %v1351 = vpack.c.b16 %v1343, %v1342
  %1360 = vmatpush.bf16.msra.mxu0 %v1351
  %1361 = vmatpush.bf16.msra.mxu0 %v1350
  %1362 = vmatpush.bf16.msra.mxu0 %v1349
  %1363 = vmatpush.bf16.msra.mxu0 %v1348
  %1364 = vmatpush.bf16.msra.mxu0 %v1347
  %1365 = vmatpush.bf16.msra.mxu0 %v1346
  %1366 = vmatpush.bf16.msra.mxu0 %v1345
  %1367 = vmatpush.bf16.msra.mxu0 %v1344
  %1368 = vmatmul.bf16.gmra.mxu0 %v1258
  %v1369 = vpop.f32.mrf.mxu0
  %v1370 = vadd.f32 %v1310, %v1369
  %v1371 = vpop.f32.mrf.mxu0
  %v1372 = vadd.f32 %v1310, %v1371
  %1373 = vmatmul.bf16.gmra.mxu0 %v1259
  %v1374 = vpop.f32.mrf.mxu0
  %v1375 = vadd.f32 %v1310, %v1374
  %v1376 = vpop.f32.mrf.mxu0
  %v1377 = vadd.f32 %v1310, %v1376
  %1378 = vmatmul.bf16.gmra.mxu0 %v1260
  %v1379 = vpop.f32.mrf.mxu0
  %v1380 = vadd.f32 %v1310, %v1379
  %v1381 = vpop.f32.mrf.mxu0
  %v1382 = vadd.f32 %v1310, %v1381
  %1383 = vmatmul.bf16.gmra.mxu0 %v1261
  %v1384 = vpop.f32.mrf.mxu0
  %v1385 = vadd.f32 %v1310, %v1384
  %v1386 = vpop.f32.mrf.mxu0
  %v1387 = vadd.f32 %v1310, %v1386
  %1388 = vmatmul.bf16.gmra.mxu0 %v1262
  %v1389 = vpop.f32.mrf.mxu0
  %v1390 = vadd.f32 %v1310, %v1389
  %v1391 = vpop.f32.mrf.mxu0
  %v1392 = vadd.f32 %v1310, %v1391
  %1393 = vmatmul.bf16.gmra.mxu0 %v1263
  %v1394 = vpop.f32.mrf.mxu0
  %v1395 = vadd.f32 %v1310, %v1394
  %v1396 = vpop.f32.mrf.mxu0
  %v1397 = vadd.f32 %v1310, %v1396
  %1398 = vmatmul.bf16.gmra.mxu0 %v1264
  %v1399 = vpop.f32.mrf.mxu0
  %v1400 = vadd.f32 %v1310, %v1399
  %v1401 = vpop.f32.mrf.mxu0
  %v1402 = vadd.f32 %v1310, %v1401
  %1403 = vmatmul.bf16.gmra.mxu0 %v1265
  %v1404 = vpop.f32.mrf.mxu0
  %v1405 = vadd.f32 %v1310, %v1404
  %v1406 = vpop.f32.mrf.mxu0
  %v1407 = vadd.f32 %v1310, %v1406
  %1408 = vmatmul.bf16.gmra.mxu0 %v1266
  %v1409 = vpop.f32.mrf.mxu0
  %v1410 = vadd.f32 %v1310, %v1409
  %v1411 = vpop.f32.mrf.mxu0
  %v1412 = vadd.f32 %v1310, %v1411
  %1413 = vmatmul.bf16.gmra.mxu0 %v1267
  %v1414 = vpop.f32.mrf.mxu0
  %v1415 = vadd.f32 %v1310, %v1414
  %v1416 = vpop.f32.mrf.mxu0
  %v1417 = vadd.f32 %v1310, %v1416
  %1418 = vmatmul.bf16.gmra.mxu0 %v1268
  %v1419 = vpop.f32.mrf.mxu0
  %v1420 = vadd.f32 %v1310, %v1419
  %v1421 = vpop.f32.mrf.mxu0
  %v1422 = vadd.f32 %v1310, %v1421
  %1423 = vmatmul.bf16.gmra.mxu0 %v1269
  %v1424 = vpop.f32.mrf.mxu0
  %v1425 = vadd.f32 %v1310, %v1424
  %v1426 = vpop.f32.mrf.mxu0
  %v1427 = vadd.f32 %v1310, %v1426
  %1428 = vmatmul.bf16.gmra.mxu0 %v1270
  %v1429 = vpop.f32.mrf.mxu0
  %v1430 = vadd.f32 %v1310, %v1429
  %v1431 = vpop.f32.mrf.mxu0
  %v1432 = vadd.f32 %v1310, %v1431
  %1433 = vmatmul.bf16.gmra.mxu0 %v1271
  %v1434 = vpop.f32.mrf.mxu0
  %v1435 = vadd.f32 %v1310, %v1434
  %v1436 = vpop.f32.mrf.mxu0
  %v1437 = vadd.f32 %v1310, %v1436
  %1438 = vmatmul.bf16.gmra.mxu0 %v1272
  %v1439 = vpop.f32.mrf.mxu0
  %v1440 = vadd.f32 %v1310, %v1439
  %v1441 = vpop.f32.mrf.mxu0
  %v1442 = vadd.f32 %v1310, %v1441
  %1443 = vmatmul.bf16.gmra.mxu0 %v1273
  %v1444 = vpop.f32.mrf.mxu0
  %v1445 = vadd.f32 %v1310, %v1444
  %v1446 = vpop.f32.mrf.mxu0
  %v1447 = vadd.f32 %v1310, %v1446
  %1448 = vmatmul.bf16.gmra.mxu0 %v1274
  %v1449 = vpop.f32.mrf.mxu0
  %v1450 = vadd.f32 %v1310, %v1449
  %v1451 = vpop.f32.mrf.mxu0
  %v1452 = vadd.f32 %v1310, %v1451
  %1453 = vmatmul.bf16.gmra.mxu0 %v1275
  %v1454 = vpop.f32.mrf.mxu0
  %v1455 = vadd.f32 %v1310, %v1454
  %v1456 = vpop.f32.mrf.mxu0
  %v1457 = vadd.f32 %v1310, %v1456
  %1458 = vmatmul.bf16.gmra.mxu0 %v1276
  %v1459 = vpop.f32.mrf.mxu0
  %v1460 = vadd.f32 %v1310, %v1459
  %v1461 = vpop.f32.mrf.mxu0
  %v1462 = vadd.f32 %v1310, %v1461
  %1463 = vmatmul.bf16.gmra.mxu0 %v1277
  %v1464 = vpop.f32.mrf.mxu0
  %v1465 = vadd.f32 %v1310, %v1464
  %v1466 = vpop.f32.mrf.mxu0
  %v1467 = vadd.f32 %v1310, %v1466
  %1468 = vmatmul.bf16.gmra.mxu0 %v1278
  %v1469 = vpop.f32.mrf.mxu0
  %v1470 = vadd.f32 %v1310, %v1469
  %v1471 = vpop.f32.mrf.mxu0
  %v1472 = vadd.f32 %v1310, %v1471
  %1473 = vmatmul.bf16.gmra.mxu0 %v1279
  %v1474 = vpop.f32.mrf.mxu0
  %v1475 = vadd.f32 %v1310, %v1474
  %v1476 = vpop.f32.mrf.mxu0
  %v1477 = vadd.f32 %v1310, %v1476
  %1478 = vmatmul.bf16.gmra.mxu0 %v1280
  %v1479 = vpop.f32.mrf.mxu0
  %v1480 = vadd.f32 %v1310, %v1479
  %v1481 = vpop.f32.mrf.mxu0
  %v1482 = vadd.f32 %v1310, %v1481
  %1483 = vmatmul.bf16.gmra.mxu0 %v1281
  %v1484 = vpop.f32.mrf.mxu0
  %v1485 = vadd.f32 %v1310, %v1484
  %v1486 = vpop.f32.mrf.mxu0
  %v1487 = vadd.f32 %v1310, %v1486
  %1488 = vmatmul.bf16.gmra.mxu0 %v1282
  %v1489 = vpop.f32.mrf.mxu0
  %v1490 = vadd.f32 %v1310, %v1489
  %v1491 = vpop.f32.mrf.mxu0
  %v1492 = vadd.f32 %v1310, %v1491
  %1493 = vmatmul.bf16.gmra.mxu0 %v1283
  %v1494 = vpop.f32.mrf.mxu0
  %v1495 = vadd.f32 %v1310, %v1494
  %v1496 = vpop.f32.mrf.mxu0
  %v1497 = vadd.f32 %v1310, %v1496
  %1498 = vmatmul.bf16.gmra.mxu0 %v1284
  %v1499 = vpop.f32.mrf.mxu0
  %v1500 = vadd.f32 %v1310, %v1499
  %v1501 = vpop.f32.mrf.mxu0
  %v1502 = vadd.f32 %v1310, %v1501
  %1503 = vmatmul.bf16.gmra.mxu0 %v1285
  %v1504 = vpop.f32.mrf.mxu0
  %v1505 = vadd.f32 %v1310, %v1504
  %v1506 = vpop.f32.mrf.mxu0
  %v1507 = vadd.f32 %v1310, %v1506
  %1508 = vmatmul.bf16.gmra.mxu0 %v1286
  %v1509 = vpop.f32.mrf.mxu0
  %v1510 = vadd.f32 %v1310, %v1509
  %v1511 = vpop.f32.mrf.mxu0
  %v1512 = vadd.f32 %v1310, %v1511
  %1513 = vmatmul.bf16.gmra.mxu0 %v1287
  %v1514 = vpop.f32.mrf.mxu0
  %v1515 = vadd.f32 %v1310, %v1514
  %v1516 = vpop.f32.mrf.mxu0
  %v1517 = vadd.f32 %v1310, %v1516
  %1518 = vmatmul.bf16.gmra.mxu0 %v1288
  %v1519 = vpop.f32.mrf.mxu0
  %v1520 = vadd.f32 %v1310, %v1519
  %v1521 = vpop.f32.mrf.mxu0
  %v1522 = vadd.f32 %v1310, %v1521
  %1523 = vmatmul.bf16.gmra.mxu0 %v1289
  %v1524 = vpop.f32.mrf.mxu0
  %v1525 = vadd.f32 %v1310, %v1524
  %v1526 = vpop.f32.mrf.mxu0
  %v1527 = vadd.f32 %v1310, %v1526
  %1528 = vdwg.mxu0
  %v1529 = vmax.f32 %v1370, 0.0
  %v1530 = vmax.f32 %v1372, 0.0
  %v1531 = vmax.f32 %v1375, 0.0
  %v1532 = vmax.f32 %v1377, 0.0
  %v1533 = vmax.f32 %v1380, 0.0
  %v1534 = vmax.f32 %v1382, 0.0
  %v1535 = vmax.f32 %v1385, 0.0
  %v1536 = vmax.f32 %v1387, 0.0
  %v1537 = vmax.f32 %v1390, 0.0
  %v1538 = vmax.f32 %v1392, 0.0
  %v1539 = vmax.f32 %v1395, 0.0
  %v1540 = vmax.f32 %v1397, 0.0
  %v1541 = vmax.f32 %v1400, 0.0
  %v1542 = vmax.f32 %v1402, 0.0
  %v1543 = vmax.f32 %v1405, 0.0
  %v1544 = vmax.f32 %v1407, 0.0
  %v1545 = vmax.f32 %v1410, 0.0
  %v1546 = vmax.f32 %v1412, 0.0
  %v1547 = vmax.f32 %v1415, 0.0
  %v1548 = vmax.f32 %v1417, 0.0
  %v1549 = vmax.f32 %v1420, 0.0
  %v1550 = vmax.f32 %v1422, 0.0
  %v1551 = vmax.f32 %v1425, 0.0
  %v1552 = vmax.f32 %v1427, 0.0
  %v1553 = vmax.f32 %v1430, 0.0
  %v1554 = vmax.f32 %v1432, 0.0
  %v1555 = vmax.f32 %v1435, 0.0
  %v1556 = vmax.f32 %v1437, 0.0
  %v1557 = vmax.f32 %v1440, 0.0
  %v1558 = vmax.f32 %v1442, 0.0
  %v1559 = vmax.f32 %v1445, 0.0
  %v1560 = vmax.f32 %v1447, 0.0
  %v1561 = vmax.f32 %v1450, 0.0
  %v1562 = vmax.f32 %v1452, 0.0
  %v1563 = vmax.f32 %v1455, 0.0
  %v1564 = vmax.f32 %v1457, 0.0
  %v1565 = vmax.f32 %v1460, 0.0
  %v1566 = vmax.f32 %v1462, 0.0
  %v1567 = vmax.f32 %v1465, 0.0
  %v1568 = vmax.f32 %v1467, 0.0
  %v1569 = vmax.f32 %v1470, 0.0
  %v1570 = vmax.f32 %v1472, 0.0
  %v1571 = vmax.f32 %v1475, 0.0
  %v1572 = vmax.f32 %v1477, 0.0
  %v1573 = vmax.f32 %v1480, 0.0
  %v1574 = vmax.f32 %v1482, 0.0
  %v1575 = vmax.f32 %v1485, 0.0
  %v1576 = vmax.f32 %v1487, 0.0
  %v1577 = vmax.f32 %v1490, 0.0
  %v1578 = vmax.f32 %v1492, 0.0
  %v1579 = vmax.f32 %v1495, 0.0
  %v1580 = vmax.f32 %v1497, 0.0
  %v1581 = vmax.f32 %v1500, 0.0
  %v1582 = vmax.f32 %v1502, 0.0
  %v1583 = vmax.f32 %v1505, 0.0
  %v1584 = vmax.f32 %v1507, 0.0
  %v1585 = vmax.f32 %v1510, 0.0
  %v1586 = vmax.f32 %v1512, 0.0
  %v1587 = vmax.f32 %v1515, 0.0
  %v1588 = vmax.f32 %v1517, 0.0
  %v1589 = vmax.f32 %v1520, 0.0
  %v1590 = vmax.f32 %v1522, 0.0
  %v1591 = vmax.f32 %v1525, 0.0
  %v1592 = vmax.f32 %v1527, 0.0
  %v1593 = vpack.c.bf16 %v1530, %v1529
  %v1594 = vpack.c.bf16 %v1532, %v1531
  %v1595 = vpack.c.bf16 %v1534, %v1533
  %v1596 = vpack.c.bf16 %v1536, %v1535
  %v1597 = vpack.c.bf16 %v1538, %v1537
  %v1598 = vpack.c.bf16 %v1540, %v1539
  %v1599 = vpack.c.bf16 %v1542, %v1541
  %v1600 = vpack.c.bf16 %v1544, %v1543
  %v1601 = vpack.c.bf16 %v1546, %v1545
  %v1602 = vpack.c.bf16 %v1548, %v1547
  %v1603 = vpack.c.bf16 %v1550, %v1549
  %v1604 = vpack.c.bf16 %v1552, %v1551
  %v1605 = vpack.c.bf16 %v1554, %v1553
  %v1606 = vpack.c.bf16 %v1556, %v1555
  %v1607 = vpack.c.bf16 %v1558, %v1557
  %v1608 = vpack.c.bf16 %v1560, %v1559
  %v1609 = vpack.c.bf16 %v1562, %v1561
  %v1610 = vpack.c.bf16 %v1564, %v1563
  %v1611 = vpack.c.bf16 %v1566, %v1565
  %v1612 = vpack.c.bf16 %v1568, %v1567
  %v1613 = vpack.c.bf16 %v1570, %v1569
  %v1614 = vpack.c.bf16 %v1572, %v1571
  %v1615 = vpack.c.bf16 %v1574, %v1573
  %v1616 = vpack.c.bf16 %v1576, %v1575
  %v1617 = vpack.c.bf16 %v1578, %v1577
  %v1618 = vpack.c.bf16 %v1580, %v1579
  %v1619 = vpack.c.bf16 %v1582, %v1581
  %v1620 = vpack.c.bf16 %v1584, %v1583
  %v1621 = vpack.c.bf16 %v1586, %v1585
  %v1622 = vpack.c.bf16 %v1588, %v1587
  %v1623 = vpack.c.bf16 %v1590, %v1589
  %v1624 = vpack.c.bf16 %v1592, %v1591
  %s1625 = scalar_lea.vmem %s3, 192
  %v1626 = vld [vmem:[%s1625] sm:$0xf]
  %v1627 = vld [vmem:[%s1625 + $0x4] sm:$0xf]
  %v1628 = vld [vmem:[%s1625 + $0x8] sm:$0xf]
  %v1629 = vld [vmem:[%s1625 + $0xc] sm:$0xf]
  %v1630 = vld [vmem:[%s1625 + $0x10] sm:$0xf]
  %v1631 = vld [vmem:[%s1625 + $0x14] sm:$0xf]
  %v1632 = vld [vmem:[%s1625 + $0x18] sm:$0xf]
  %v1633 = vld [vmem:[%s1625 + $0x1c] sm:$0xf]
  %v1634 = vld [vmem:[%s1625 + $0x20] sm:$0xf]
  %v1635 = vld [vmem:[%s1625 + $0x24] sm:$0xf]
  %v1636 = vld [vmem:[%s1625 + $0x28] sm:$0xf]
  %v1637 = vld [vmem:[%s1625 + $0x2c] sm:$0xf]
  %v1638 = vld [vmem:[%s1625 + $0x30] sm:$0xf]
  %v1639 = vld [vmem:[%s1625 + $0x34] sm:$0xf]
  %v1640 = vld [vmem:[%s1625 + $0x38] sm:$0xf]
  %v1641 = vld [vmem:[%s1625 + $0x3c] sm:$0xf]
  %s1642 = scalar_lea.vmem %s4, 3
  %v1643 = vld [vmem:[%s1642] sm:$0x1]
  %v1645 = vperm.slane %v1643, 0
  %v1663 = vunpack.c.l.b16 %v1626
  %v1664 = vunpack.c.l.b16 %v1627
  %v1665 = vunpack.c.l.b16 %v1628
  %v1666 = vunpack.c.l.b16 %v1629
  %v1667 = vunpack.c.l.b16 %v1630
  %v1668 = vunpack.c.l.b16 %v1631
  %v1669 = vunpack.c.l.b16 %v1632
  %v1670 = vunpack.c.l.b16 %v1633
  %v1671 = vunpack.c.l.b16 %v1634
  %v1672 = vunpack.c.l.b16 %v1635
  %v1673 = vunpack.c.l.b16 %v1636
  %v1674 = vunpack.c.l.b16 %v1637
  %v1675 = vunpack.c.l.b16 %v1638
  %v1676 = vunpack.c.l.b16 %v1639
  %v1677 = vunpack.c.l.b16 %v1640
  %v1678 = vunpack.c.l.b16 %v1641
  %v1679 = vpack.c.b16 %v1664, %v1663
  %v1680 = vpack.c.b16 %v1666, %v1665
  %v1681 = vpack.c.b16 %v1668, %v1667
  %v1682 = vpack.c.b16 %v1670, %v1669
  %v1683 = vpack.c.b16 %v1672, %v1671
  %v1684 = vpack.c.b16 %v1674, %v1673
  %v1685 = vpack.c.b16 %v1676, %v1675
  %v1686 = vpack.c.b16 %v1678, %v1677
  %1695 = vmatpush.bf16.msra.mxu0 %v1686
  %1696 = vmatpush.bf16.msra.mxu0 %v1685
  %1697 = vmatpush.bf16.msra.mxu0 %v1684
  %1698 = vmatpush.bf16.msra.mxu0 %v1683
  %1699 = vmatpush.bf16.msra.mxu0 %v1682
  %1700 = vmatpush.bf16.msra.mxu0 %v1681
  %1701 = vmatpush.bf16.msra.mxu0 %v1680
  %1702 = vmatpush.bf16.msra.mxu0 %v1679
  %1703 = vmatmul.bf16.gmra.mxu0 %v1593
  %v1704 = vpop.f32.mrf.mxu0
  %v1705 = vadd.f32 %v1645, %v1704
  %v1706 = vpop.f32.mrf.mxu0
  %v1707 = vadd.f32 %v1645, %v1706
  %1708 = vmatmul.bf16.gmra.mxu0 %v1594
  %v1709 = vpop.f32.mrf.mxu0
  %v1710 = vadd.f32 %v1645, %v1709
  %v1711 = vpop.f32.mrf.mxu0
  %v1712 = vadd.f32 %v1645, %v1711
  %1713 = vmatmul.bf16.gmra.mxu0 %v1595
  %v1714 = vpop.f32.mrf.mxu0
  %v1715 = vadd.f32 %v1645, %v1714
  %v1716 = vpop.f32.mrf.mxu0
  %v1717 = vadd.f32 %v1645, %v1716
  %1718 = vmatmul.bf16.gmra.mxu0 %v1596
  %v1719 = vpop.f32.mrf.mxu0
  %v1720 = vadd.f32 %v1645, %v1719
  %v1721 = vpop.f32.mrf.mxu0
  %v1722 = vadd.f32 %v1645, %v1721
  %1723 = vmatmul.bf16.gmra.mxu0 %v1597
  %v1724 = vpop.f32.mrf.mxu0
  %v1725 = vadd.f32 %v1645, %v1724
  %v1726 = vpop.f32.mrf.mxu0
  %v1727 = vadd.f32 %v1645, %v1726
  %1728 = vmatmul.bf16.gmra.mxu0 %v1598
  %v1729 = vpop.f32.mrf.mxu0
  %v1730 = vadd.f32 %v1645, %v1729
  %v1731 = vpop.f32.mrf.mxu0
  %v1732 = vadd.f32 %v1645, %v1731
  %1733 = vmatmul.bf16.gmra.mxu0 %v1599
  %v1734 = vpop.f32.mrf.mxu0
  %v1735 = vadd.f32 %v1645, %v1734
  %v1736 = vpop.f32.mrf.mxu0
  %v1737 = vadd.f32 %v1645, %v1736
  %1738 = vmatmul.bf16.gmra.mxu0 %v1600
  %v1739 = vpop.f32.mrf.mxu0
  %v1740 = vadd.f32 %v1645, %v1739
  %v1741 = vpop.f32.mrf.mxu0
  %v1742 = vadd.f32 %v1645, %v1741
  %1743 = vmatmul.bf16.gmra.mxu0 %v1601
  %v1744 = vpop.f32.mrf.mxu0
  %v1745 = vadd.f32 %v1645, %v1744
  %v1746 = vpop.f32.mrf.mxu0
  %v1747 = vadd.f32 %v1645, %v1746
  %1748 = vmatmul.bf16.gmra.mxu0 %v1602
  %v1749 = vpop.f32.mrf.mxu0
  %v1750 = vadd.f32 %v1645, %v1749
  %v1751 = vpop.f32.mrf.mxu0
  %v1752 = vadd.f32 %v1645, %v1751
  %1753 = vmatmul.bf16.gmra.mxu0 %v1603
  %v1754 = vpop.f32.mrf.mxu0
  %v1755 = vadd.f32 %v1645, %v1754
  %v1756 = vpop.f32.mrf.mxu0
  %v1757 = vadd.f32 %v1645, %v1756
  %1758 = vmatmul.bf16.gmra.mxu0 %v1604
  %v1759 = vpop.f32.mrf.mxu0
  %v1760 = vadd.f32 %v1645, %v1759
  %v1761 = vpop.f32.mrf.mxu0
  %v1762 = vadd.f32 %v1645, %v1761
  %1763 = vmatmul.bf16.gmra.mxu0 %v1605
  %v1764 = vpop.f32.mrf.mxu0
  %v1765 = vadd.f32 %v1645, %v1764
  %v1766 = vpop.f32.mrf.mxu0
  %v1767 = vadd.f32 %v1645, %v1766
  %1768 = vmatmul.bf16.gmra.mxu0 %v1606
  %v1769 = vpop.f32.mrf.mxu0
  %v1770 = vadd.f32 %v1645, %v1769
  %v1771 = vpop.f32.mrf.mxu0
  %v1772 = vadd.f32 %v1645, %v1771
  %1773 = vmatmul.bf16.gmra.mxu0 %v1607
  %v1774 = vpop.f32.mrf.mxu0
  %v1775 = vadd.f32 %v1645, %v1774
  %v1776 = vpop.f32.mrf.mxu0
  %v1777 = vadd.f32 %v1645, %v1776
  %1778 = vmatmul.bf16.gmra.mxu0 %v1608
  %v1779 = vpop.f32.mrf.mxu0
  %v1780 = vadd.f32 %v1645, %v1779
  %v1781 = vpop.f32.mrf.mxu0
  %v1782 = vadd.f32 %v1645, %v1781
  %1783 = vmatmul.bf16.gmra.mxu0 %v1609
  %v1784 = vpop.f32.mrf.mxu0
  %v1785 = vadd.f32 %v1645, %v1784
  %v1786 = vpop.f32.mrf.mxu0
  %v1787 = vadd.f32 %v1645, %v1786
  %1788 = vmatmul.bf16.gmra.mxu0 %v1610
  %v1789 = vpop.f32.mrf.mxu0
  %v1790 = vadd.f32 %v1645, %v1789
  %v1791 = vpop.f32.mrf.mxu0
  %v1792 = vadd.f32 %v1645, %v1791
  %1793 = vmatmul.bf16.gmra.mxu0 %v1611
  %v1794 = vpop.f32.mrf.mxu0
  %v1795 = vadd.f32 %v1645, %v1794
  %v1796 = vpop.f32.mrf.mxu0
  %v1797 = vadd.f32 %v1645, %v1796
  %1798 = vmatmul.bf16.gmra.mxu0 %v1612
  %v1799 = vpop.f32.mrf.mxu0
  %v1800 = vadd.f32 %v1645, %v1799
  %v1801 = vpop.f32.mrf.mxu0
  %v1802 = vadd.f32 %v1645, %v1801
  %1803 = vmatmul.bf16.gmra.mxu0 %v1613
  %v1804 = vpop.f32.mrf.mxu0
  %v1805 = vadd.f32 %v1645, %v1804
  %v1806 = vpop.f32.mrf.mxu0
  %v1807 = vadd.f32 %v1645, %v1806
  %1808 = vmatmul.bf16.gmra.mxu0 %v1614
  %v1809 = vpop.f32.mrf.mxu0
  %v1810 = vadd.f32 %v1645, %v1809
  %v1811 = vpop.f32.mrf.mxu0
  %v1812 = vadd.f32 %v1645, %v1811
  %1813 = vmatmul.bf16.gmra.mxu0 %v1615
  %v1814 = vpop.f32.mrf.mxu0
  %v1815 = vadd.f32 %v1645, %v1814
  %v1816 = vpop.f32.mrf.mxu0
  %v1817 = vadd.f32 %v1645, %v1816
  %1818 = vmatmul.bf16.gmra.mxu0 %v1616
  %v1819 = vpop.f32.mrf.mxu0
  %v1820 = vadd.f32 %v1645, %v1819
  %v1821 = vpop.f32.mrf.mxu0
  %v1822 = vadd.f32 %v1645, %v1821
  %1823 = vmatmul.bf16.gmra.mxu0 %v1617
  %v1824 = vpop.f32.mrf.mxu0
  %v1825 = vadd.f32 %v1645, %v1824
  %v1826 = vpop.f32.mrf.mxu0
  %v1827 = vadd.f32 %v1645, %v1826
  %1828 = vmatmul.bf16.gmra.mxu0 %v1618
  %v1829 = vpop.f32.mrf.mxu0
  %v1830 = vadd.f32 %v1645, %v1829
  %v1831 = vpop.f32.mrf.mxu0
  %v1832 = vadd.f32 %v1645, %v1831
  %1833 = vmatmul.bf16.gmra.mxu0 %v1619
  %v1834 = vpop.f32.mrf.mxu0
  %v1835 = vadd.f32 %v1645, %v1834
  %v1836 = vpop.f32.mrf.mxu0
  %v1837 = vadd.f32 %v1645, %v1836
  %1838 = vmatmul.bf16.gmra.mxu0 %v1620
  %v1839 = vpop.f32.mrf.mxu0
  %v1840 = vadd.f32 %v1645, %v1839
  %v1841 = vpop.f32.mrf.mxu0
  %v1842 = vadd.f32 %v1645, %v1841
  %1843 = vmatmul.bf16.gmra.mxu0 %v1621
  %v1844 = vpop.f32.mrf.mxu0
  %v1845 = vadd.f32 %v1645, %v1844
  %v1846 = vpop.f32.mrf.mxu0
  %v1847 = vadd.f32 %v1645, %v1846
  %1848 = vmatmul.bf16.gmra.mxu0 %v1622
  %v1849 = vpop.f32.mrf.mxu0
  %v1850 = vadd.f32 %v1645, %v1849
  %v1851 = vpop.f32.mrf.mxu0
  %v1852 = vadd.f32 %v1645, %v1851
  %1853 = vmatmul.bf16.gmra.mxu0 %v1623
  %v1854 = vpop.f32.mrf.mxu0
  %v1855 = vadd.f32 %v1645, %v1854
  %v1856 = vpop.f32.mrf.mxu0
  %v1857 = vadd.f32 %v1645, %v1856
  %1858 = vmatmul.bf16.gmra.mxu0 %v1624
  %v1859 = vpop.f32.mrf.mxu0
  %v1860 = vadd.f32 %v1645, %v1859
  %v1861 = vpop.f32.mrf.mxu0
  %v1862 = vadd.f32 %v1645, %v1861
  %1863 = vdwg.mxu0
  %v1864 = vmax.f32 %v1705, 0.0
  %v1865 = vmax.f32 %v1707, 0.0
  %v1866 = vmax.f32 %v1710, 0.0
  %v1867 = vmax.f32 %v1712, 0.0
  %v1868 = vmax.f32 %v1715, 0.0
  %v1869 = vmax.f32 %v1717, 0.0
  %v1870 = vmax.f32 %v1720, 0.0
  %v1871 = vmax.f32 %v1722, 0.0
  %v1872 = vmax.f32 %v1725, 0.0
  %v1873 = vmax.f32 %v1727, 0.0
  %v1874 = vmax.f32 %v1730, 0.0
  %v1875 = vmax.f32 %v1732, 0.0
  %v1876 = vmax.f32 %v1735, 0.0
  %v1877 = vmax.f32 %v1737, 0.0
  %v1878 = vmax.f32 %v1740, 0.0
  %v1879 = vmax.f32 %v1742, 0.0
  %v1880 = vmax.f32 %v1745, 0.0
  %v1881 = vmax.f32 %v1747, 0.0
  %v1882 = vmax.f32 %v1750, 0.0
  %v1883 = vmax.f32 %v1752, 0.0
  %v1884 = vmax.f32 %v1755, 0.0
  %v1885 = vmax.f32 %v1757, 0.0
  %v1886 = vmax.f32 %v1760, 0.0
  %v1887 = vmax.f32 %v1762, 0.0
  %v1888 = vmax.f32 %v1765, 0.0
  %v1889 = vmax.f32 %v1767, 0.0
  %v1890 = vmax.f32 %v1770, 0.0
  %v1891 = vmax.f32 %v1772, 0.0
  %v1892 = vmax.f32 %v1775, 0.0
  %v1893 = vmax.f32 %v1777, 0.0
  %v1894 = vmax.f32 %v1780, 0.0
  %v1895 = vmax.f32 %v1782, 0.0
  %v1896 = vmax.f32 %v1785, 0.0
  %v1897 = vmax.f32 %v1787, 0.0
  %v1898 = vmax.f32 %v1790, 0.0
  %v1899 = vmax.f32 %v1792, 0.0
  %v1900 = vmax.f32 %v1795, 0.0
  %v1901 = vmax.f32 %v1797, 0.0
  %v1902 = vmax.f32 %v1800, 0.0
  %v1903 = vmax.f32 %v1802, 0.0
  %v1904 = vmax.f32 %v1805, 0.0
  %v1905 = vmax.f32 %v1807, 0.0
  %v1906 = vmax.f32 %v1810, 0.0
  %v1907 = vmax.f32 %v1812, 0.0
  %v1908 = vmax.f32 %v1815, 0.0
  %v1909 = vmax.f32 %v1817, 0.0
  %v1910 = vmax.f32 %v1820, 0.0
  %v1911 = vmax.f32 %v1822, 0.0
  %v1912 = vmax.f32 %v1825, 0.0
  %v1913 = vmax.f32 %v1827, 0.0
  %v1914 = vmax.f32 %v1830, 0.0
  %v1915 = vmax.f32 %v1832, 0.0
  %v1916 = vmax.f32 %v1835, 0.0
  %v1917 = vmax.f32 %v1837, 0.0
  %v1918 = vmax.f32 %v1840, 0.0
  %v1919 = vmax.f32 %v1842, 0.0
  %v1920 = vmax.f32 %v1845, 0.0
  %v1921 = vmax.f32 %v1847, 0.0
  %v1922 = vmax.f32 %v1850, 0.0
  %v1923 = vmax.f32 %v1852, 0.0
  %v1924 = vmax.f32 %v1855, 0.0
  %v1925 = vmax.f32 %v1857, 0.0
  %v1926 = vmax.f32 %v1860, 0.0
  %v1927 = vmax.f32 %v1862, 0.0
  %v1928 = vpack.c.bf16 %v1865, %v1864
  %v1929 = vpack.c.bf16 %v1867, %v1866
  %v1930 = vpack.c.bf16 %v1869, %v1868
  %v1931 = vpack.c.bf16 %v1871, %v1870
  %v1932 = vpack.c.bf16 %v1873, %v1872
  %v1933 = vpack.c.bf16 %v1875, %v1874
  %v1934 = vpack.c.bf16 %v1877, %v1876
  %v1935 = vpack.c.bf16 %v1879, %v1878
  %v1936 = vpack.c.bf16 %v1881, %v1880
  %v1937 = vpack.c.bf16 %v1883, %v1882
  %v1938 = vpack.c.bf16 %v1885, %v1884
  %v1939 = vpack.c.bf16 %v1887, %v1886
  %v1940 = vpack.c.bf16 %v1889, %v1888
  %v1941 = vpack.c.bf16 %v1891, %v1890
  %v1942 = vpack.c.bf16 %v1893, %v1892
  %v1943 = vpack.c.bf16 %v1895, %v1894
  %v1944 = vpack.c.bf16 %v1897, %v1896
  %v1945 = vpack.c.bf16 %v1899, %v1898
  %v1946 = vpack.c.bf16 %v1901, %v1900
  %v1947 = vpack.c.bf16 %v1903, %v1902
  %v1948 = vpack.c.bf16 %v1905, %v1904
  %v1949 = vpack.c.bf16 %v1907, %v1906
  %v1950 = vpack.c.bf16 %v1909, %v1908
  %v1951 = vpack.c.bf16 %v1911, %v1910
  %v1952 = vpack.c.bf16 %v1913, %v1912
  %v1953 = vpack.c.bf16 %v1915, %v1914
  %v1954 = vpack.c.bf16 %v1917, %v1916
  %v1955 = vpack.c.bf16 %v1919, %v1918
  %v1956 = vpack.c.bf16 %v1921, %v1920
  %v1957 = vpack.c.bf16 %v1923, %v1922
  %v1958 = vpack.c.bf16 %v1925, %v1924
  %v1959 = vpack.c.bf16 %v1927, %v1926
  %s1960 = scalar_lea.vmem %s3, 256
  %v1961 = vld [vmem:[%s1960] sm:$0xf]
  %v1962 = vld [vmem:[%s1960 + $0x4] sm:$0xf]
  %v1963 = vld [vmem:[%s1960 + $0x8] sm:$0xf]
  %v1964 = vld [vmem:[%s1960 + $0xc] sm:$0xf]
  %v1965 = vld [vmem:[%s1960 + $0x10] sm:$0xf]
  %v1966 = vld [vmem:[%s1960 + $0x14] sm:$0xf]
  %v1967 = vld [vmem:[%s1960 + $0x18] sm:$0xf]
  %v1968 = vld [vmem:[%s1960 + $0x1c] sm:$0xf]
  %v1969 = vld [vmem:[%s1960 + $0x20] sm:$0xf]
  %v1970 = vld [vmem:[%s1960 + $0x24] sm:$0xf]
  %v1971 = vld [vmem:[%s1960 + $0x28] sm:$0xf]
  %v1972 = vld [vmem:[%s1960 + $0x2c] sm:$0xf]
  %v1973 = vld [vmem:[%s1960 + $0x30] sm:$0xf]
  %v1974 = vld [vmem:[%s1960 + $0x34] sm:$0xf]
  %v1975 = vld [vmem:[%s1960 + $0x38] sm:$0xf]
  %v1976 = vld [vmem:[%s1960 + $0x3c] sm:$0xf]
  %s1977 = scalar_lea.vmem %s4, 4
  %v1978 = vld [vmem:[%s1977] sm:$0x1]
  %v1980 = vperm.slane %v1978, 0
  %v1998 = vunpack.c.l.b16 %v1961
  %v1999 = vunpack.c.l.b16 %v1962
  %v2000 = vunpack.c.l.b16 %v1963
  %v2001 = vunpack.c.l.b16 %v1964
  %v2002 = vunpack.c.l.b16 %v1965
  %v2003 = vunpack.c.l.b16 %v1966
  %v2004 = vunpack.c.l.b16 %v1967
  %v2005 = vunpack.c.l.b16 %v1968
  %v2006 = vunpack.c.l.b16 %v1969
  %v2007 = vunpack.c.l.b16 %v1970
  %v2008 = vunpack.c.l.b16 %v1971
  %v2009 = vunpack.c.l.b16 %v1972
  %v2010 = vunpack.c.l.b16 %v1973
  %v2011 = vunpack.c.l.b16 %v1974
  %v2012 = vunpack.c.l.b16 %v1975
  %v2013 = vunpack.c.l.b16 %v1976
  %v2014 = vpack.c.b16 %v1999, %v1998
  %v2015 = vpack.c.b16 %v2001, %v2000
  %v2016 = vpack.c.b16 %v2003, %v2002
  %v2017 = vpack.c.b16 %v2005, %v2004
  %v2018 = vpack.c.b16 %v2007, %v2006
  %v2019 = vpack.c.b16 %v2009, %v2008
  %v2020 = vpack.c.b16 %v2011, %v2010
  %v2021 = vpack.c.b16 %v2013, %v2012
  %2030 = vmatpush.bf16.msra.mxu0 %v2021
  %2031 = vmatpush.bf16.msra.mxu0 %v2020
  %2032 = vmatpush.bf16.msra.mxu0 %v2019
  %2033 = vmatpush.bf16.msra.mxu0 %v2018
  %2034 = vmatpush.bf16.msra.mxu0 %v2017
  %2035 = vmatpush.bf16.msra.mxu0 %v2016
  %2036 = vmatpush.bf16.msra.mxu0 %v2015
  %2037 = vmatpush.bf16.msra.mxu0 %v2014
  %2038 = vmatmul.bf16.gmra.mxu0 %v1928
  %v2039 = vpop.f32.mrf.mxu0
  %v2040 = vadd.f32 %v1980, %v2039
  %v2041 = vpop.f32.mrf.mxu0
  %v2042 = vadd.f32 %v1980, %v2041
  %2043 = vmatmul.bf16.gmra.mxu0 %v1929
  %v2044 = vpop.f32.mrf.mxu0
  %v2045 = vadd.f32 %v1980, %v2044
  %v2046 = vpop.f32.mrf.mxu0
  %v2047 = vadd.f32 %v1980, %v2046
  %2048 = vmatmul.bf16.gmra.mxu0 %v1930
  %v2049 = vpop.f32.mrf.mxu0
  %v2050 = vadd.f32 %v1980, %v2049
  %v2051 = vpop.f32.mrf.mxu0
  %v2052 = vadd.f32 %v1980, %v2051
  %2053 = vmatmul.bf16.gmra.mxu0 %v1931
  %v2054 = vpop.f32.mrf.mxu0
  %v2055 = vadd.f32 %v1980, %v2054
  %v2056 = vpop.f32.mrf.mxu0
  %v2057 = vadd.f32 %v1980, %v2056
  %2058 = vmatmul.bf16.gmra.mxu0 %v1932
  %v2059 = vpop.f32.mrf.mxu0
  %v2060 = vadd.f32 %v1980, %v2059
  %v2061 = vpop.f32.mrf.mxu0
  %v2062 = vadd.f32 %v1980, %v2061
  %2063 = vmatmul.bf16.gmra.mxu0 %v1933
  %v2064 = vpop.f32.mrf.mxu0
  %v2065 = vadd.f32 %v1980, %v2064
  %v2066 = vpop.f32.mrf.mxu0
  %v2067 = vadd.f32 %v1980, %v2066
  %2068 = vmatmul.bf16.gmra.mxu0 %v1934
  %v2069 = vpop.f32.mrf.mxu0
  %v2070 = vadd.f32 %v1980, %v2069
  %v2071 = vpop.f32.mrf.mxu0
  %v2072 = vadd.f32 %v1980, %v2071
  %2073 = vmatmul.bf16.gmra.mxu0 %v1935
  %v2074 = vpop.f32.mrf.mxu0
  %v2075 = vadd.f32 %v1980, %v2074
  %v2076 = vpop.f32.mrf.mxu0
  %v2077 = vadd.f32 %v1980, %v2076
  %2078 = vmatmul.bf16.gmra.mxu0 %v1936
  %v2079 = vpop.f32.mrf.mxu0
  %v2080 = vadd.f32 %v1980, %v2079
  %v2081 = vpop.f32.mrf.mxu0
  %v2082 = vadd.f32 %v1980, %v2081
  %2083 = vmatmul.bf16.gmra.mxu0 %v1937
  %v2084 = vpop.f32.mrf.mxu0
  %v2085 = vadd.f32 %v1980, %v2084
  %v2086 = vpop.f32.mrf.mxu0
  %v2087 = vadd.f32 %v1980, %v2086
  %2088 = vmatmul.bf16.gmra.mxu0 %v1938
  %v2089 = vpop.f32.mrf.mxu0
  %v2090 = vadd.f32 %v1980, %v2089
  %v2091 = vpop.f32.mrf.mxu0
  %v2092 = vadd.f32 %v1980, %v2091
  %2093 = vmatmul.bf16.gmra.mxu0 %v1939
  %v2094 = vpop.f32.mrf.mxu0
  %v2095 = vadd.f32 %v1980, %v2094
  %v2096 = vpop.f32.mrf.mxu0
  %v2097 = vadd.f32 %v1980, %v2096
  %2098 = vmatmul.bf16.gmra.mxu0 %v1940
  %v2099 = vpop.f32.mrf.mxu0
  %v2100 = vadd.f32 %v1980, %v2099
  %v2101 = vpop.f32.mrf.mxu0
  %v2102 = vadd.f32 %v1980, %v2101
  %2103 = vmatmul.bf16.gmra.mxu0 %v1941
  %v2104 = vpop.f32.mrf.mxu0
  %v2105 = vadd.f32 %v1980, %v2104
  %v2106 = vpop.f32.mrf.mxu0
  %v2107 = vadd.f32 %v1980, %v2106
  %2108 = vmatmul.bf16.gmra.mxu0 %v1942
  %v2109 = vpop.f32.mrf.mxu0
  %v2110 = vadd.f32 %v1980, %v2109
  %v2111 = vpop.f32.mrf.mxu0
  %v2112 = vadd.f32 %v1980, %v2111
  %2113 = vmatmul.bf16.gmra.mxu0 %v1943
  %v2114 = vpop.f32.mrf.mxu0
  %v2115 = vadd.f32 %v1980, %v2114
  %v2116 = vpop.f32.mrf.mxu0
  %v2117 = vadd.f32 %v1980, %v2116
  %2118 = vmatmul.bf16.gmra.mxu0 %v1944
  %v2119 = vpop.f32.mrf.mxu0
  %v2120 = vadd.f32 %v1980, %v2119
  %v2121 = vpop.f32.mrf.mxu0
  %v2122 = vadd.f32 %v1980, %v2121
  %2123 = vmatmul.bf16.gmra.mxu0 %v1945
  %v2124 = vpop.f32.mrf.mxu0
  %v2125 = vadd.f32 %v1980, %v2124
  %v2126 = vpop.f32.mrf.mxu0
  %v2127 = vadd.f32 %v1980, %v2126
  %2128 = vmatmul.bf16.gmra.mxu0 %v1946
  %v2129 = vpop.f32.mrf.mxu0
  %v2130 = vadd.f32 %v1980, %v2129
  %v2131 = vpop.f32.mrf.mxu0
  %v2132 = vadd.f32 %v1980, %v2131
  %2133 = vmatmul.bf16.gmra.mxu0 %v1947
  %v2134 = vpop.f32.mrf.mxu0
  %v2135 = vadd.f32 %v1980, %v2134
  %v2136 = vpop.f32.mrf.mxu0
  %v2137 = vadd.f32 %v1980, %v2136
  %2138 = vmatmul.bf16.gmra.mxu0 %v1948
  %v2139 = vpop.f32.mrf.mxu0
  %v2140 = vadd.f32 %v1980, %v2139
  %v2141 = vpop.f32.mrf.mxu0
  %v2142 = vadd.f32 %v1980, %v2141
  %2143 = vmatmul.bf16.gmra.mxu0 %v1949
  %v2144 = vpop.f32.mrf.mxu0
  %v2145 = vadd.f32 %v1980, %v2144
  %v2146 = vpop.f32.mrf.mxu0
  %v2147 = vadd.f32 %v1980, %v2146
  %2148 = vmatmul.bf16.gmra.mxu0 %v1950
  %v2149 = vpop.f32.mrf.mxu0
  %v2150 = vadd.f32 %v1980, %v2149
  %v2151 = vpop.f32.mrf.mxu0
  %v2152 = vadd.f32 %v1980, %v2151
  %2153 = vmatmul.bf16.gmra.mxu0 %v1951
  %v2154 = vpop.f32.mrf.mxu0
  %v2155 = vadd.f32 %v1980, %v2154
  %v2156 = vpop.f32.mrf.mxu0
  %v2157 = vadd.f32 %v1980, %v2156
  %2158 = vmatmul.bf16.gmra.mxu0 %v1952
  %v2159 = vpop.f32.mrf.mxu0
  %v2160 = vadd.f32 %v1980, %v2159
  %v2161 = vpop.f32.mrf.mxu0
  %v2162 = vadd.f32 %v1980, %v2161
  %2163 = vmatmul.bf16.gmra.mxu0 %v1953
  %v2164 = vpop.f32.mrf.mxu0
  %v2165 = vadd.f32 %v1980, %v2164
  %v2166 = vpop.f32.mrf.mxu0
  %v2167 = vadd.f32 %v1980, %v2166
  %2168 = vmatmul.bf16.gmra.mxu0 %v1954
  %v2169 = vpop.f32.mrf.mxu0
  %v2170 = vadd.f32 %v1980, %v2169
  %v2171 = vpop.f32.mrf.mxu0
  %v2172 = vadd.f32 %v1980, %v2171
  %2173 = vmatmul.bf16.gmra.mxu0 %v1955
  %v2174 = vpop.f32.mrf.mxu0
  %v2175 = vadd.f32 %v1980, %v2174
  %v2176 = vpop.f32.mrf.mxu0
  %v2177 = vadd.f32 %v1980, %v2176
  %2178 = vmatmul.bf16.gmra.mxu0 %v1956
  %v2179 = vpop.f32.mrf.mxu0
  %v2180 = vadd.f32 %v1980, %v2179
  %v2181 = vpop.f32.mrf.mxu0
  %v2182 = vadd.f32 %v1980, %v2181
  %2183 = vmatmul.bf16.gmra.mxu0 %v1957
  %v2184 = vpop.f32.mrf.mxu0
  %v2185 = vadd.f32 %v1980, %v2184
  %v2186 = vpop.f32.mrf.mxu0
  %v2187 = vadd.f32 %v1980, %v2186
  %2188 = vmatmul.bf16.gmra.mxu0 %v1958
  %v2189 = vpop.f32.mrf.mxu0
  %v2190 = vadd.f32 %v1980, %v2189
  %v2191 = vpop.f32.mrf.mxu0
  %v2192 = vadd.f32 %v1980, %v2191
  %2193 = vmatmul.bf16.gmra.mxu0 %v1959
  %v2194 = vpop.f32.mrf.mxu0
  %v2195 = vadd.f32 %v1980, %v2194
  %v2196 = vpop.f32.mrf.mxu0
  %v2197 = vadd.f32 %v1980, %v2196
  %2198 = vdwg.mxu0
  %v2199 = vmax.f32 %v2040, 0.0
  %v2200 = vmax.f32 %v2042, 0.0
  %v2201 = vmax.f32 %v2045, 0.0
  %v2202 = vmax.f32 %v2047, 0.0
  %v2203 = vmax.f32 %v2050, 0.0
  %v2204 = vmax.f32 %v2052, 0.0
  %v2205 = vmax.f32 %v2055, 0.0
  %v2206 = vmax.f32 %v2057, 0.0
  %v2207 = vmax.f32 %v2060, 0.0
  %v2208 = vmax.f32 %v2062, 0.0
  %v2209 = vmax.f32 %v2065, 0.0
  %v2210 = vmax.f32 %v2067, 0.0
  %v2211 = vmax.f32 %v2070, 0.0
  %v2212 = vmax.f32 %v2072, 0.0
  %v2213 = vmax.f32 %v2075, 0.0
  %v2214 = vmax.f32 %v2077, 0.0
  %v2215 = vmax.f32 %v2080, 0.0
  %v2216 = vmax.f32 %v2082, 0.0
  %v2217 = vmax.f32 %v2085, 0.0
  %v2218 = vmax.f32 %v2087, 0.0
  %v2219 = vmax.f32 %v2090, 0.0
  %v2220 = vmax.f32 %v2092, 0.0
  %v2221 = vmax.f32 %v2095, 0.0
  %v2222 = vmax.f32 %v2097, 0.0
  %v2223 = vmax.f32 %v2100, 0.0
  %v2224 = vmax.f32 %v2102, 0.0
  %v2225 = vmax.f32 %v2105, 0.0
  %v2226 = vmax.f32 %v2107, 0.0
  %v2227 = vmax.f32 %v2110, 0.0
  %v2228 = vmax.f32 %v2112, 0.0
  %v2229 = vmax.f32 %v2115, 0.0
  %v2230 = vmax.f32 %v2117, 0.0
  %v2231 = vmax.f32 %v2120, 0.0
  %v2232 = vmax.f32 %v2122, 0.0
  %v2233 = vmax.f32 %v2125, 0.0
  %v2234 = vmax.f32 %v2127, 0.0
  %v2235 = vmax.f32 %v2130, 0.0
  %v2236 = vmax.f32 %v2132, 0.0
  %v2237 = vmax.f32 %v2135, 0.0
  %v2238 = vmax.f32 %v2137, 0.0
  %v2239 = vmax.f32 %v2140, 0.0
  %v2240 = vmax.f32 %v2142, 0.0
  %v2241 = vmax.f32 %v2145, 0.0
  %v2242 = vmax.f32 %v2147, 0.0
  %v2243 = vmax.f32 %v2150, 0.0
  %v2244 = vmax.f32 %v2152, 0.0
  %v2245 = vmax.f32 %v2155, 0.0
  %v2246 = vmax.f32 %v2157, 0.0
  %v2247 = vmax.f32 %v2160, 0.0
  %v2248 = vmax.f32 %v2162, 0.0
  %v2249 = vmax.f32 %v2165, 0.0
  %v2250 = vmax.f32 %v2167, 0.0
  %v2251 = vmax.f32 %v2170, 0.0
  %v2252 = vmax.f32 %v2172, 0.0
  %v2253 = vmax.f32 %v2175, 0.0
  %v2254 = vmax.f32 %v2177, 0.0
  %v2255 = vmax.f32 %v2180, 0.0
  %v2256 = vmax.f32 %v2182, 0.0
  %v2257 = vmax.f32 %v2185, 0.0
  %v2258 = vmax.f32 %v2187, 0.0
  %v2259 = vmax.f32 %v2190, 0.0
  %v2260 = vmax.f32 %v2192, 0.0
  %v2261 = vmax.f32 %v2195, 0.0
  %v2262 = vmax.f32 %v2197, 0.0
  %v2263 = vpack.c.bf16 %v2200, %v2199
  %v2264 = vpack.c.bf16 %v2202, %v2201
  %v2265 = vpack.c.bf16 %v2204, %v2203
  %v2266 = vpack.c.bf16 %v2206, %v2205
  %v2267 = vpack.c.bf16 %v2208, %v2207
  %v2268 = vpack.c.bf16 %v2210, %v2209
  %v2269 = vpack.c.bf16 %v2212, %v2211
  %v2270 = vpack.c.bf16 %v2214, %v2213
  %v2271 = vpack.c.bf16 %v2216, %v2215
  %v2272 = vpack.c.bf16 %v2218, %v2217
  %v2273 = vpack.c.bf16 %v2220, %v2219
  %v2274 = vpack.c.bf16 %v2222, %v2221
  %v2275 = vpack.c.bf16 %v2224, %v2223
  %v2276 = vpack.c.bf16 %v2226, %v2225
  %v2277 = vpack.c.bf16 %v2228, %v2227
  %v2278 = vpack.c.bf16 %v2230, %v2229
  %v2279 = vpack.c.bf16 %v2232, %v2231
  %v2280 = vpack.c.bf16 %v2234, %v2233
  %v2281 = vpack.c.bf16 %v2236, %v2235
  %v2282 = vpack.c.bf16 %v2238, %v2237
  %v2283 = vpack.c.bf16 %v2240, %v2239
  %v2284 = vpack.c.bf16 %v2242, %v2241
  %v2285 = vpack.c.bf16 %v2244, %v2243
  %v2286 = vpack.c.bf16 %v2246, %v2245
  %v2287 = vpack.c.bf16 %v2248, %v2247
  %v2288 = vpack.c.bf16 %v2250, %v2249
  %v2289 = vpack.c.bf16 %v2252, %v2251
  %v2290 = vpack.c.bf16 %v2254, %v2253
  %v2291 = vpack.c.bf16 %v2256, %v2255
  %v2292 = vpack.c.bf16 %v2258, %v2257
  %v2293 = vpack.c.bf16 %v2260, %v2259
  %v2294 = vpack.c.bf16 %v2262, %v2261
  %s2295 = scalar_lea.vmem %s3, 320
  %v2296 = vld [vmem:[%s2295] sm:$0xf]
  %v2297 = vld [vmem:[%s2295 + $0x4] sm:$0xf]
  %v2298 = vld [vmem:[%s2295 + $0x8] sm:$0xf]
  %v2299 = vld [vmem:[%s2295 + $0xc] sm:$0xf]
  %v2300 = vld [vmem:[%s2295 + $0x10] sm:$0xf]
  %v2301 = vld [vmem:[%s2295 + $0x14] sm:$0xf]
  %v2302 = vld [vmem:[%s2295 + $0x18] sm:$0xf]
  %v2303 = vld [vmem:[%s2295 + $0x1c] sm:$0xf]
  %v2304 = vld [vmem:[%s2295 + $0x20] sm:$0xf]
  %v2305 = vld [vmem:[%s2295 + $0x24] sm:$0xf]
  %v2306 = vld [vmem:[%s2295 + $0x28] sm:$0xf]
  %v2307 = vld [vmem:[%s2295 + $0x2c] sm:$0xf]
  %v2308 = vld [vmem:[%s2295 + $0x30] sm:$0xf]
  %v2309 = vld [vmem:[%s2295 + $0x34] sm:$0xf]
  %v2310 = vld [vmem:[%s2295 + $0x38] sm:$0xf]
  %v2311 = vld [vmem:[%s2295 + $0x3c] sm:$0xf]
  %s2312 = scalar_lea.vmem %s4, 5
  %v2313 = vld [vmem:[%s2312] sm:$0x1]
  %v2315 = vperm.slane %v2313, 0
  %v2333 = vunpack.c.l.b16 %v2296
  %v2334 = vunpack.c.l.b16 %v2297
  %v2335 = vunpack.c.l.b16 %v2298
  %v2336 = vunpack.c.l.b16 %v2299
  %v2337 = vunpack.c.l.b16 %v2300
  %v2338 = vunpack.c.l.b16 %v2301
  %v2339 = vunpack.c.l.b16 %v2302
  %v2340 = vunpack.c.l.b16 %v2303
  %v2341 = vunpack.c.l.b16 %v2304
  %v2342 = vunpack.c.l.b16 %v2305
  %v2343 = vunpack.c.l.b16 %v2306
  %v2344 = vunpack.c.l.b16 %v2307
  %v2345 = vunpack.c.l.b16 %v2308
  %v2346 = vunpack.c.l.b16 %v2309
  %v2347 = vunpack.c.l.b16 %v2310
  %v2348 = vunpack.c.l.b16 %v2311
  %v2349 = vpack.c.b16 %v2334, %v2333
  %v2350 = vpack.c.b16 %v2336, %v2335
  %v2351 = vpack.c.b16 %v2338, %v2337
  %v2352 = vpack.c.b16 %v2340, %v2339
  %v2353 = vpack.c.b16 %v2342, %v2341
  %v2354 = vpack.c.b16 %v2344, %v2343
  %v2355 = vpack.c.b16 %v2346, %v2345
  %v2356 = vpack.c.b16 %v2348, %v2347
  %2365 = vmatpush.bf16.msra.mxu0 %v2356
  %2366 = vmatpush.bf16.msra.mxu0 %v2355
  %2367 = vmatpush.bf16.msra.mxu0 %v2354
  %2368 = vmatpush.bf16.msra.mxu0 %v2353
  %2369 = vmatpush.bf16.msra.mxu0 %v2352
  %2370 = vmatpush.bf16.msra.mxu0 %v2351
  %2371 = vmatpush.bf16.msra.mxu0 %v2350
  %2372 = vmatpush.bf16.msra.mxu0 %v2349
  %2373 = vmatmul.bf16.gmra.mxu0 %v2263
  %v2374 = vpop.f32.mrf.mxu0
  %v2375 = vadd.f32 %v2315, %v2374
  %v2376 = vpop.f32.mrf.mxu0
  %v2377 = vadd.f32 %v2315, %v2376
  %2378 = vmatmul.bf16.gmra.mxu0 %v2264
  %v2379 = vpop.f32.mrf.mxu0
  %v2380 = vadd.f32 %v2315, %v2379
  %v2381 = vpop.f32.mrf.mxu0
  %v2382 = vadd.f32 %v2315, %v2381
  %2383 = vmatmul.bf16.gmra.mxu0 %v2265
  %v2384 = vpop.f32.mrf.mxu0
  %v2385 = vadd.f32 %v2315, %v2384
  %v2386 = vpop.f32.mrf.mxu0
  %v2387 = vadd.f32 %v2315, %v2386
  %2388 = vmatmul.bf16.gmra.mxu0 %v2266
  %v2389 = vpop.f32.mrf.mxu0
  %v2390 = vadd.f32 %v2315, %v2389
  %v2391 = vpop.f32.mrf.mxu0
  %v2392 = vadd.f32 %v2315, %v2391
  %2393 = vmatmul.bf16.gmra.mxu0 %v2267
  %v2394 = vpop.f32.mrf.mxu0
  %v2395 = vadd.f32 %v2315, %v2394
  %v2396 = vpop.f32.mrf.mxu0
  %v2397 = vadd.f32 %v2315, %v2396
  %2398 = vmatmul.bf16.gmra.mxu0 %v2268
  %v2399 = vpop.f32.mrf.mxu0
  %v2400 = vadd.f32 %v2315, %v2399
  %v2401 = vpop.f32.mrf.mxu0
  %v2402 = vadd.f32 %v2315, %v2401
  %2403 = vmatmul.bf16.gmra.mxu0 %v2269
  %v2404 = vpop.f32.mrf.mxu0
  %v2405 = vadd.f32 %v2315, %v2404
  %v2406 = vpop.f32.mrf.mxu0
  %v2407 = vadd.f32 %v2315, %v2406
  %2408 = vmatmul.bf16.gmra.mxu0 %v2270
  %v2409 = vpop.f32.mrf.mxu0
  %v2410 = vadd.f32 %v2315, %v2409
  %v2411 = vpop.f32.mrf.mxu0
  %v2412 = vadd.f32 %v2315, %v2411
  %2413 = vmatmul.bf16.gmra.mxu0 %v2271
  %v2414 = vpop.f32.mrf.mxu0
  %v2415 = vadd.f32 %v2315, %v2414
  %v2416 = vpop.f32.mrf.mxu0
  %v2417 = vadd.f32 %v2315, %v2416
  %2418 = vmatmul.bf16.gmra.mxu0 %v2272
  %v2419 = vpop.f32.mrf.mxu0
  %v2420 = vadd.f32 %v2315, %v2419
  %v2421 = vpop.f32.mrf.mxu0
  %v2422 = vadd.f32 %v2315, %v2421
  %2423 = vmatmul.bf16.gmra.mxu0 %v2273
  %v2424 = vpop.f32.mrf.mxu0
  %v2425 = vadd.f32 %v2315, %v2424
  %v2426 = vpop.f32.mrf.mxu0
  %v2427 = vadd.f32 %v2315, %v2426
  %2428 = vmatmul.bf16.gmra.mxu0 %v2274
  %v2429 = vpop.f32.mrf.mxu0
  %v2430 = vadd.f32 %v2315, %v2429
  %v2431 = vpop.f32.mrf.mxu0
  %v2432 = vadd.f32 %v2315, %v2431
  %2433 = vmatmul.bf16.gmra.mxu0 %v2275
  %v2434 = vpop.f32.mrf.mxu0
  %v2435 = vadd.f32 %v2315, %v2434
  %v2436 = vpop.f32.mrf.mxu0
  %v2437 = vadd.f32 %v2315, %v2436
  %2438 = vmatmul.bf16.gmra.mxu0 %v2276
  %v2439 = vpop.f32.mrf.mxu0
  %v2440 = vadd.f32 %v2315, %v2439
  %v2441 = vpop.f32.mrf.mxu0
  %v2442 = vadd.f32 %v2315, %v2441
  %2443 = vmatmul.bf16.gmra.mxu0 %v2277
  %v2444 = vpop.f32.mrf.mxu0
  %v2445 = vadd.f32 %v2315, %v2444
  %v2446 = vpop.f32.mrf.mxu0
  %v2447 = vadd.f32 %v2315, %v2446
  %2448 = vmatmul.bf16.gmra.mxu0 %v2278
  %v2449 = vpop.f32.mrf.mxu0
  %v2450 = vadd.f32 %v2315, %v2449
  %v2451 = vpop.f32.mrf.mxu0
  %v2452 = vadd.f32 %v2315, %v2451
  %2453 = vmatmul.bf16.gmra.mxu0 %v2279
  %v2454 = vpop.f32.mrf.mxu0
  %v2455 = vadd.f32 %v2315, %v2454
  %v2456 = vpop.f32.mrf.mxu0
  %v2457 = vadd.f32 %v2315, %v2456
  %2458 = vmatmul.bf16.gmra.mxu0 %v2280
  %v2459 = vpop.f32.mrf.mxu0
  %v2460 = vadd.f32 %v2315, %v2459
  %v2461 = vpop.f32.mrf.mxu0
  %v2462 = vadd.f32 %v2315, %v2461
  %2463 = vmatmul.bf16.gmra.mxu0 %v2281
  %v2464 = vpop.f32.mrf.mxu0
  %v2465 = vadd.f32 %v2315, %v2464
  %v2466 = vpop.f32.mrf.mxu0
  %v2467 = vadd.f32 %v2315, %v2466
  %2468 = vmatmul.bf16.gmra.mxu0 %v2282
  %v2469 = vpop.f32.mrf.mxu0
  %v2470 = vadd.f32 %v2315, %v2469
  %v2471 = vpop.f32.mrf.mxu0
  %v2472 = vadd.f32 %v2315, %v2471
  %2473 = vmatmul.bf16.gmra.mxu0 %v2283
  %v2474 = vpop.f32.mrf.mxu0
  %v2475 = vadd.f32 %v2315, %v2474
  %v2476 = vpop.f32.mrf.mxu0
  %v2477 = vadd.f32 %v2315, %v2476
  %2478 = vmatmul.bf16.gmra.mxu0 %v2284
  %v2479 = vpop.f32.mrf.mxu0
  %v2480 = vadd.f32 %v2315, %v2479
  %v2481 = vpop.f32.mrf.mxu0
  %v2482 = vadd.f32 %v2315, %v2481
  %2483 = vmatmul.bf16.gmra.mxu0 %v2285
  %v2484 = vpop.f32.mrf.mxu0
  %v2485 = vadd.f32 %v2315, %v2484
  %v2486 = vpop.f32.mrf.mxu0
  %v2487 = vadd.f32 %v2315, %v2486
  %2488 = vmatmul.bf16.gmra.mxu0 %v2286
  %v2489 = vpop.f32.mrf.mxu0
  %v2490 = vadd.f32 %v2315, %v2489
  %v2491 = vpop.f32.mrf.mxu0
  %v2492 = vadd.f32 %v2315, %v2491
  %2493 = vmatmul.bf16.gmra.mxu0 %v2287
  %v2494 = vpop.f32.mrf.mxu0
  %v2495 = vadd.f32 %v2315, %v2494
  %v2496 = vpop.f32.mrf.mxu0
  %v2497 = vadd.f32 %v2315, %v2496
  %2498 = vmatmul.bf16.gmra.mxu0 %v2288
  %v2499 = vpop.f32.mrf.mxu0
  %v2500 = vadd.f32 %v2315, %v2499
  %v2501 = vpop.f32.mrf.mxu0
  %v2502 = vadd.f32 %v2315, %v2501
  %2503 = vmatmul.bf16.gmra.mxu0 %v2289
  %v2504 = vpop.f32.mrf.mxu0
  %v2505 = vadd.f32 %v2315, %v2504
  %v2506 = vpop.f32.mrf.mxu0
  %v2507 = vadd.f32 %v2315, %v2506
  %2508 = vmatmul.bf16.gmra.mxu0 %v2290
  %v2509 = vpop.f32.mrf.mxu0
  %v2510 = vadd.f32 %v2315, %v2509
  %v2511 = vpop.f32.mrf.mxu0
  %v2512 = vadd.f32 %v2315, %v2511
  %2513 = vmatmul.bf16.gmra.mxu0 %v2291
  %v2514 = vpop.f32.mrf.mxu0
  %v2515 = vadd.f32 %v2315, %v2514
  %v2516 = vpop.f32.mrf.mxu0
  %v2517 = vadd.f32 %v2315, %v2516
  %2518 = vmatmul.bf16.gmra.mxu0 %v2292
  %v2519 = vpop.f32.mrf.mxu0
  %v2520 = vadd.f32 %v2315, %v2519
  %v2521 = vpop.f32.mrf.mxu0
  %v2522 = vadd.f32 %v2315, %v2521
  %2523 = vmatmul.bf16.gmra.mxu0 %v2293
  %v2524 = vpop.f32.mrf.mxu0
  %v2525 = vadd.f32 %v2315, %v2524
  %v2526 = vpop.f32.mrf.mxu0
  %v2527 = vadd.f32 %v2315, %v2526
  %2528 = vmatmul.bf16.gmra.mxu0 %v2294
  %v2529 = vpop.f32.mrf.mxu0
  %v2530 = vadd.f32 %v2315, %v2529
  %v2531 = vpop.f32.mrf.mxu0
  %v2532 = vadd.f32 %v2315, %v2531
  %2533 = vdwg.mxu0
  %v2534 = vmax.f32 %v2375, 0.0
  %v2535 = vmax.f32 %v2377, 0.0
  %v2536 = vmax.f32 %v2380, 0.0
  %v2537 = vmax.f32 %v2382, 0.0
  %v2538 = vmax.f32 %v2385, 0.0
  %v2539 = vmax.f32 %v2387, 0.0
  %v2540 = vmax.f32 %v2390, 0.0
  %v2541 = vmax.f32 %v2392, 0.0
  %v2542 = vmax.f32 %v2395, 0.0
  %v2543 = vmax.f32 %v2397, 0.0
  %v2544 = vmax.f32 %v2400, 0.0
  %v2545 = vmax.f32 %v2402, 0.0
  %v2546 = vmax.f32 %v2405, 0.0
  %v2547 = vmax.f32 %v2407, 0.0
  %v2548 = vmax.f32 %v2410, 0.0
  %v2549 = vmax.f32 %v2412, 0.0
  %v2550 = vmax.f32 %v2415, 0.0
  %v2551 = vmax.f32 %v2417, 0.0
  %v2552 = vmax.f32 %v2420, 0.0
  %v2553 = vmax.f32 %v2422, 0.0
  %v2554 = vmax.f32 %v2425, 0.0
  %v2555 = vmax.f32 %v2427, 0.0
  %v2556 = vmax.f32 %v2430, 0.0
  %v2557 = vmax.f32 %v2432, 0.0
  %v2558 = vmax.f32 %v2435, 0.0
  %v2559 = vmax.f32 %v2437, 0.0
  %v2560 = vmax.f32 %v2440, 0.0
  %v2561 = vmax.f32 %v2442, 0.0
  %v2562 = vmax.f32 %v2445, 0.0
  %v2563 = vmax.f32 %v2447, 0.0
  %v2564 = vmax.f32 %v2450, 0.0
  %v2565 = vmax.f32 %v2452, 0.0
  %v2566 = vmax.f32 %v2455, 0.0
  %v2567 = vmax.f32 %v2457, 0.0
  %v2568 = vmax.f32 %v2460, 0.0
  %v2569 = vmax.f32 %v2462, 0.0
  %v2570 = vmax.f32 %v2465, 0.0
  %v2571 = vmax.f32 %v2467, 0.0
  %v2572 = vmax.f32 %v2470, 0.0
  %v2573 = vmax.f32 %v2472, 0.0
  %v2574 = vmax.f32 %v2475, 0.0
  %v2575 = vmax.f32 %v2477, 0.0
  %v2576 = vmax.f32 %v2480, 0.0
  %v2577 = vmax.f32 %v2482, 0.0
  %v2578 = vmax.f32 %v2485, 0.0
  %v2579 = vmax.f32 %v2487, 0.0
  %v2580 = vmax.f32 %v2490, 0.0
  %v2581 = vmax.f32 %v2492, 0.0
  %v2582 = vmax.f32 %v2495, 0.0
  %v2583 = vmax.f32 %v2497, 0.0
  %v2584 = vmax.f32 %v2500, 0.0
  %v2585 = vmax.f32 %v2502, 0.0
  %v2586 = vmax.f32 %v2505, 0.0
  %v2587 = vmax.f32 %v2507, 0.0
  %v2588 = vmax.f32 %v2510, 0.0
  %v2589 = vmax.f32 %v2512, 0.0
  %v2590 = vmax.f32 %v2515, 0.0
  %v2591 = vmax.f32 %v2517, 0.0
  %v2592 = vmax.f32 %v2520, 0.0
  %v2593 = vmax.f32 %v2522, 0.0
  %v2594 = vmax.f32 %v2525, 0.0
  %v2595 = vmax.f32 %v2527, 0.0
  %v2596 = vmax.f32 %v2530, 0.0
  %v2597 = vmax.f32 %v2532, 0.0
  %v2598 = vpack.c.bf16 %v2535, %v2534
  %v2599 = vpack.c.bf16 %v2537, %v2536
  %v2600 = vpack.c.bf16 %v2539, %v2538
  %v2601 = vpack.c.bf16 %v2541, %v2540
  %v2602 = vpack.c.bf16 %v2543, %v2542
  %v2603 = vpack.c.bf16 %v2545, %v2544
  %v2604 = vpack.c.bf16 %v2547, %v2546
  %v2605 = vpack.c.bf16 %v2549, %v2548
  %v2606 = vpack.c.bf16 %v2551, %v2550
  %v2607 = vpack.c.bf16 %v2553, %v2552
  %v2608 = vpack.c.bf16 %v2555, %v2554
  %v2609 = vpack.c.bf16 %v2557, %v2556
  %v2610 = vpack.c.bf16 %v2559, %v2558
  %v2611 = vpack.c.bf16 %v2561, %v2560
  %v2612 = vpack.c.bf16 %v2563, %v2562
  %v2613 = vpack.c.bf16 %v2565, %v2564
  %v2614 = vpack.c.bf16 %v2567, %v2566
  %v2615 = vpack.c.bf16 %v2569, %v2568
  %v2616 = vpack.c.bf16 %v2571, %v2570
  %v2617 = vpack.c.bf16 %v2573, %v2572
  %v2618 = vpack.c.bf16 %v2575, %v2574
  %v2619 = vpack.c.bf16 %v2577, %v2576
  %v2620 = vpack.c.bf16 %v2579, %v2578
  %v2621 = vpack.c.bf16 %v2581, %v2580
  %v2622 = vpack.c.bf16 %v2583, %v2582
  %v2623 = vpack.c.bf16 %v2585, %v2584
  %v2624 = vpack.c.bf16 %v2587, %v2586
  %v2625 = vpack.c.bf16 %v2589, %v2588
  %v2626 = vpack.c.bf16 %v2591, %v2590
  %v2627 = vpack.c.bf16 %v2593, %v2592
  %v2628 = vpack.c.bf16 %v2595, %v2594
  %v2629 = vpack.c.bf16 %v2597, %v2596
  %v2630 = vld [vmem:[%s5] sm:$0xf]
  %v2631 = vld [vmem:[%s5 + $0x4] sm:$0xf]
  %v2632 = vld [vmem:[%s5 + $0x8] sm:$0xf]
  %v2633 = vld [vmem:[%s5 + $0xc] sm:$0xf]
  %v2634 = vld [vmem:[%s5 + $0x10] sm:$0xf]
  %v2635 = vld [vmem:[%s5 + $0x14] sm:$0xf]
  %v2636 = vld [vmem:[%s5 + $0x18] sm:$0xf]
  %v2637 = vld [vmem:[%s5 + $0x1c] sm:$0xf]
  %v2638 = vld [vmem:[%s5 + $0x20] sm:$0xf]
  %v2639 = vld [vmem:[%s5 + $0x24] sm:$0xf]
  %v2640 = vld [vmem:[%s5 + $0x28] sm:$0xf]
  %v2641 = vld [vmem:[%s5 + $0x2c] sm:$0xf]
  %v2642 = vld [vmem:[%s5 + $0x30] sm:$0xf]
  %v2643 = vld [vmem:[%s5 + $0x34] sm:$0xf]
  %v2644 = vld [vmem:[%s5 + $0x38] sm:$0xf]
  %v2645 = vld [vmem:[%s5 + $0x3c] sm:$0xf]
  %v2646 = vld [vmem:[%s6] sm:$0x1]
  %v2648 = vperm.slane %v2646, 0
  %v2666 = vunpack.c.l.b16 %v2630
  %v2667 = vunpack.c.l.b16 %v2631
  %v2668 = vunpack.c.l.b16 %v2632
  %v2669 = vunpack.c.l.b16 %v2633
  %v2670 = vunpack.c.l.b16 %v2634
  %v2671 = vunpack.c.l.b16 %v2635
  %v2672 = vunpack.c.l.b16 %v2636
  %v2673 = vunpack.c.l.b16 %v2637
  %v2674 = vunpack.c.l.b16 %v2638
  %v2675 = vunpack.c.l.b16 %v2639
  %v2676 = vunpack.c.l.b16 %v2640
  %v2677 = vunpack.c.l.b16 %v2641
  %v2678 = vunpack.c.l.b16 %v2642
  %v2679 = vunpack.c.l.b16 %v2643
  %v2680 = vunpack.c.l.b16 %v2644
  %v2681 = vunpack.c.l.b16 %v2645
  %v2682 = vpack.c.b16 %v2667, %v2666
  %v2683 = vpack.c.b16 %v2669, %v2668
  %v2684 = vpack.c.b16 %v2671, %v2670
  %v2685 = vpack.c.b16 %v2673, %v2672
  %v2686 = vpack.c.b16 %v2675, %v2674
  %v2687 = vpack.c.b16 %v2677, %v2676
  %v2688 = vpack.c.b16 %v2679, %v2678
  %v2689 = vpack.c.b16 %v2681, %v2680
  %2698 = vmatpush.bf16.msra.mxu0 %v2689
  %2699 = vmatpush.bf16.msra.mxu0 %v2688
  %2700 = vmatpush.bf16.msra.mxu0 %v2687
  %2701 = vmatpush.bf16.msra.mxu0 %v2686
  %2702 = vmatpush.bf16.msra.mxu0 %v2685
  %2703 = vmatpush.bf16.msra.mxu0 %v2684
  %2704 = vmatpush.bf16.msra.mxu0 %v2683
  %2705 = vmatpush.bf16.msra.mxu0 %v2682
  %2706 = vmatmul.bf16.gmra.mxu0 %v2598
  %v2707 = vpop.f32.mrf.mxu0
  %v2708 = vadd.f32 %v2648, %v2707
  %v2709 = vpop.f32.mrf.mxu0
  %v2710 = vadd.f32 %v2648, %v2709
  %2711 = vmatmul.bf16.gmra.mxu0 %v2599
  %v2712 = vpop.f32.mrf.mxu0
  %v2713 = vadd.f32 %v2648, %v2712
  %v2714 = vpop.f32.mrf.mxu0
  %v2715 = vadd.f32 %v2648, %v2714
  %2716 = vmatmul.bf16.gmra.mxu0 %v2600
  %v2717 = vpop.f32.mrf.mxu0
  %v2718 = vadd.f32 %v2648, %v2717
  %v2719 = vpop.f32.mrf.mxu0
  %v2720 = vadd.f32 %v2648, %v2719
  %2721 = vmatmul.bf16.gmra.mxu0 %v2601
  %v2722 = vpop.f32.mrf.mxu0
  %v2723 = vadd.f32 %v2648, %v2722
  %v2724 = vpop.f32.mrf.mxu0
  %v2725 = vadd.f32 %v2648, %v2724
  %2726 = vmatmul.bf16.gmra.mxu0 %v2602
  %v2727 = vpop.f32.mrf.mxu0
  %v2728 = vadd.f32 %v2648, %v2727
  %v2729 = vpop.f32.mrf.mxu0
  %v2730 = vadd.f32 %v2648, %v2729
  %2731 = vmatmul.bf16.gmra.mxu0 %v2603
  %v2732 = vpop.f32.mrf.mxu0
  %v2733 = vadd.f32 %v2648, %v2732
  %v2734 = vpop.f32.mrf.mxu0
  %v2735 = vadd.f32 %v2648, %v2734
  %2736 = vmatmul.bf16.gmra.mxu0 %v2604
  %v2737 = vpop.f32.mrf.mxu0
  %v2738 = vadd.f32 %v2648, %v2737
  %v2739 = vpop.f32.mrf.mxu0
  %v2740 = vadd.f32 %v2648, %v2739
  %2741 = vmatmul.bf16.gmra.mxu0 %v2605
  %v2742 = vpop.f32.mrf.mxu0
  %v2743 = vadd.f32 %v2648, %v2742
  %v2744 = vpop.f32.mrf.mxu0
  %v2745 = vadd.f32 %v2648, %v2744
  %2746 = vmatmul.bf16.gmra.mxu0 %v2606
  %v2747 = vpop.f32.mrf.mxu0
  %v2748 = vadd.f32 %v2648, %v2747
  %v2749 = vpop.f32.mrf.mxu0
  %v2750 = vadd.f32 %v2648, %v2749
  %2751 = vmatmul.bf16.gmra.mxu0 %v2607
  %v2752 = vpop.f32.mrf.mxu0
  %v2753 = vadd.f32 %v2648, %v2752
  %v2754 = vpop.f32.mrf.mxu0
  %v2755 = vadd.f32 %v2648, %v2754
  %2756 = vmatmul.bf16.gmra.mxu0 %v2608
  %v2757 = vpop.f32.mrf.mxu0
  %v2758 = vadd.f32 %v2648, %v2757
  %v2759 = vpop.f32.mrf.mxu0
  %v2760 = vadd.f32 %v2648, %v2759
  %2761 = vmatmul.bf16.gmra.mxu0 %v2609
  %v2762 = vpop.f32.mrf.mxu0
  %v2763 = vadd.f32 %v2648, %v2762
  %v2764 = vpop.f32.mrf.mxu0
  %v2765 = vadd.f32 %v2648, %v2764
  %2766 = vmatmul.bf16.gmra.mxu0 %v2610
  %v2767 = vpop.f32.mrf.mxu0
  %v2768 = vadd.f32 %v2648, %v2767
  %v2769 = vpop.f32.mrf.mxu0
  %v2770 = vadd.f32 %v2648, %v2769
  %2771 = vmatmul.bf16.gmra.mxu0 %v2611
  %v2772 = vpop.f32.mrf.mxu0
  %v2773 = vadd.f32 %v2648, %v2772
  %v2774 = vpop.f32.mrf.mxu0
  %v2775 = vadd.f32 %v2648, %v2774
  %2776 = vmatmul.bf16.gmra.mxu0 %v2612
  %v2777 = vpop.f32.mrf.mxu0
  %v2778 = vadd.f32 %v2648, %v2777
  %v2779 = vpop.f32.mrf.mxu0
  %v2780 = vadd.f32 %v2648, %v2779
  %2781 = vmatmul.bf16.gmra.mxu0 %v2613
  %v2782 = vpop.f32.mrf.mxu0
  %v2783 = vadd.f32 %v2648, %v2782
  %v2784 = vpop.f32.mrf.mxu0
  %v2785 = vadd.f32 %v2648, %v2784
  %2786 = vmatmul.bf16.gmra.mxu0 %v2614
  %v2787 = vpop.f32.mrf.mxu0
  %v2788 = vadd.f32 %v2648, %v2787
  %v2789 = vpop.f32.mrf.mxu0
  %v2790 = vadd.f32 %v2648, %v2789
  %2791 = vmatmul.bf16.gmra.mxu0 %v2615
  %v2792 = vpop.f32.mrf.mxu0
  %v2793 = vadd.f32 %v2648, %v2792
  %v2794 = vpop.f32.mrf.mxu0
  %v2795 = vadd.f32 %v2648, %v2794
  %2796 = vmatmul.bf16.gmra.mxu0 %v2616
  %v2797 = vpop.f32.mrf.mxu0
  %v2798 = vadd.f32 %v2648, %v2797
  %v2799 = vpop.f32.mrf.mxu0
  %v2800 = vadd.f32 %v2648, %v2799
  %2801 = vmatmul.bf16.gmra.mxu0 %v2617
  %v2802 = vpop.f32.mrf.mxu0
  %v2803 = vadd.f32 %v2648, %v2802
  %v2804 = vpop.f32.mrf.mxu0
  %v2805 = vadd.f32 %v2648, %v2804
  %2806 = vmatmul.bf16.gmra.mxu0 %v2618
  %v2807 = vpop.f32.mrf.mxu0
  %v2808 = vadd.f32 %v2648, %v2807
  %v2809 = vpop.f32.mrf.mxu0
  %v2810 = vadd.f32 %v2648, %v2809
  %2811 = vmatmul.bf16.gmra.mxu0 %v2619
  %v2812 = vpop.f32.mrf.mxu0
  %v2813 = vadd.f32 %v2648, %v2812
  %v2814 = vpop.f32.mrf.mxu0
  %v2815 = vadd.f32 %v2648, %v2814
  %2816 = vmatmul.bf16.gmra.mxu0 %v2620
  %v2817 = vpop.f32.mrf.mxu0
  %v2818 = vadd.f32 %v2648, %v2817
  %v2819 = vpop.f32.mrf.mxu0
  %v2820 = vadd.f32 %v2648, %v2819
  %2821 = vmatmul.bf16.gmra.mxu0 %v2621
  %v2822 = vpop.f32.mrf.mxu0
  %v2823 = vadd.f32 %v2648, %v2822
  %v2824 = vpop.f32.mrf.mxu0
  %v2825 = vadd.f32 %v2648, %v2824
  %2826 = vmatmul.bf16.gmra.mxu0 %v2622
  %v2827 = vpop.f32.mrf.mxu0
  %v2828 = vadd.f32 %v2648, %v2827
  %v2829 = vpop.f32.mrf.mxu0
  %v2830 = vadd.f32 %v2648, %v2829
  %2831 = vmatmul.bf16.gmra.mxu0 %v2623
  %v2832 = vpop.f32.mrf.mxu0
  %v2833 = vadd.f32 %v2648, %v2832
  %v2834 = vpop.f32.mrf.mxu0
  %v2835 = vadd.f32 %v2648, %v2834
  %2836 = vmatmul.bf16.gmra.mxu0 %v2624
  %v2837 = vpop.f32.mrf.mxu0
  %v2838 = vadd.f32 %v2648, %v2837
  %v2839 = vpop.f32.mrf.mxu0
  %v2840 = vadd.f32 %v2648, %v2839
  %2841 = vmatmul.bf16.gmra.mxu0 %v2625
  %v2842 = vpop.f32.mrf.mxu0
  %v2843 = vadd.f32 %v2648, %v2842
  %v2844 = vpop.f32.mrf.mxu0
  %v2845 = vadd.f32 %v2648, %v2844
  %2846 = vmatmul.bf16.gmra.mxu0 %v2626
  %v2847 = vpop.f32.mrf.mxu0
  %v2848 = vadd.f32 %v2648, %v2847
  %v2849 = vpop.f32.mrf.mxu0
  %v2850 = vadd.f32 %v2648, %v2849
  %2851 = vmatmul.bf16.gmra.mxu0 %v2627
  %v2852 = vpop.f32.mrf.mxu0
  %v2853 = vadd.f32 %v2648, %v2852
  %v2854 = vpop.f32.mrf.mxu0
  %v2855 = vadd.f32 %v2648, %v2854
  %2856 = vmatmul.bf16.gmra.mxu0 %v2628
  %v2857 = vpop.f32.mrf.mxu0
  %v2858 = vadd.f32 %v2648, %v2857
  %v2859 = vpop.f32.mrf.mxu0
  %v2860 = vadd.f32 %v2648, %v2859
  %2861 = vmatmul.bf16.gmra.mxu0 %v2629
  %v2862 = vpop.f32.mrf.mxu0
  %v2863 = vadd.f32 %v2648, %v2862
  %v2864 = vpop.f32.mrf.mxu0
  %v2865 = vadd.f32 %v2648, %v2864
  %2866 = vdwg.mxu0
  %2867 = vst [vmem:[%s7] sm:$0xff] %v2708
  %2868 = vst [vmem:[%s7 + $0x8] sm:$0xff] %v2710
  %2869 = vst [vmem:[%s7 + $0x10] sm:$0xff] %v2713
  %2870 = vst [vmem:[%s7 + $0x18] sm:$0xff] %v2715
  %2871 = vst [vmem:[%s7 + $0x20] sm:$0xff] %v2718
  %2872 = vst [vmem:[%s7 + $0x28] sm:$0xff] %v2720
  %2873 = vst [vmem:[%s7 + $0x30] sm:$0xff] %v2723
  %2874 = vst [vmem:[%s7 + $0x38] sm:$0xff] %v2725
  %2875 = vst [vmem:[%s7 + $0x40] sm:$0xff] %v2728
  %2876 = vst [vmem:[%s7 + $0x48] sm:$0xff] %v2730
  %2877 = vst [vmem:[%s7 + $0x50] sm:$0xff] %v2733
  %2878 = vst [vmem:[%s7 + $0x58] sm:$0xff] %v2735
  %2879 = vst [vmem:[%s7 + $0x60] sm:$0xff] %v2738
  %2880 = vst [vmem:[%s7 + $0x68] sm:$0xff] %v2740
  %2881 = vst [vmem:[%s7 + $0x70] sm:$0xff] %v2743
  %2882 = vst [vmem:[%s7 + $0x78] sm:$0xff] %v2745
  %2883 = vst [vmem:[%s7 + $0x80] sm:$0xff] %v2748
  %2884 = vst [vmem:[%s7 + $0x88] sm:$0xff] %v2750
  %2885 = vst [vmem:[%s7 + $0x90] sm:$0xff] %v2753
  %2886 = vst [vmem:[%s7 + $0x98] sm:$0xff] %v2755
  %2887 = vst [vmem:[%s7 + $0xa0] sm:$0xff] %v2758
  %2888 = vst [vmem:[%s7 + $0xa8] sm:$0xff] %v2760
  %2889 = vst [vmem:[%s7 + $0xb0] sm:$0xff] %v2763
  %2890 = vst [vmem:[%s7 + $0xb8] sm:$0xff] %v2765
  %2891 = vst [vmem:[%s7 + $0xc0] sm:$0xff] %v2768
  %2892 = vst [vmem:[%s7 + $0xc8] sm:$0xff] %v2770
  %2893 = vst [vmem:[%s7 + $0xd0] sm:$0xff] %v2773
  %2894 = vst [vmem:[%s7 + $0xd8] sm:$0xff] %v2775
  %2895 = vst [vmem:[%s7 + $0xe0] sm:$0xff] %v2778
  %2896 = vst [vmem:[%s7 + $0xe8] sm:$0xff] %v2780
  %2897 = vst [vmem:[%s7 + $0xf0] sm:$0xff] %v2783
  %2898 = vst [vmem:[%s7 + $0xf8] sm:$0xff] %v2785
  %2899 = vst [vmem:[%s7 + $0x100] sm:$0xff] %v2788
  %2900 = vst [vmem:[%s7 + $0x108] sm:$0xff] %v2790
  %2901 = vst [vmem:[%s7 + $0x110] sm:$0xff] %v2793
  %2902 = vst [vmem:[%s7 + $0x118] sm:$0xff] %v2795
  %2903 = vst [vmem:[%s7 + $0x120] sm:$0xff] %v2798
  %2904 = vst [vmem:[%s7 + $0x128] sm:$0xff] %v2800
  %2905 = vst [vmem:[%s7 + $0x130] sm:$0xff] %v2803
  %2906 = vst [vmem:[%s7 + $0x138] sm:$0xff] %v2805
  %2907 = vst [vmem:[%s7 + $0x140] sm:$0xff] %v2808
  %2908 = vst [vmem:[%s7 + $0x148] sm:$0xff] %v2810
  %2909 = vst [vmem:[%s7 + $0x150] sm:$0xff] %v2813
  %2910 = vst [vmem:[%s7 + $0x158] sm:$0xff] %v2815
  %2911 = vst [vmem:[%s7 + $0x160] sm:$0xff] %v2818
  %2912 = vst [vmem:[%s7 + $0x168] sm:$0xff] %v2820
  %2913 = vst [vmem:[%s7 + $0x170] sm:$0xff] %v2823
  %2914 = vst [vmem:[%s7 + $0x178] sm:$0xff] %v2825
  %2915 = vst [vmem:[%s7 + $0x180] sm:$0xff] %v2828
  %2916 = vst [vmem:[%s7 + $0x188] sm:$0xff] %v2830
  %2917 = vst [vmem:[%s7 + $0x190] sm:$0xff] %v2833
  %2918 = vst [vmem:[%s7 + $0x198] sm:$0xff] %v2835
  %2919 = vst [vmem:[%s7 + $0x1a0] sm:$0xff] %v2838
  %2920 = vst [vmem:[%s7 + $0x1a8] sm:$0xff] %v2840
  %2921 = vst [vmem:[%s7 + $0x1b0] sm:$0xff] %v2843
  %2922 = vst [vmem:[%s7 + $0x1b8] sm:$0xff] %v2845
  %2923 = vst [vmem:[%s7 + $0x1c0] sm:$0xff] %v2848
  %2924 = vst [vmem:[%s7 + $0x1c8] sm:$0xff] %v2850
  %2925 = vst [vmem:[%s7 + $0x1d0] sm:$0xff] %v2853
  %2926 = vst [vmem:[%s7 + $0x1d8] sm:$0xff] %v2855
  %2927 = vst [vmem:[%s7 + $0x1e0] sm:$0xff] %v2858
  %2928 = vst [vmem:[%s7 + $0x1e8] sm:$0xff] %v2860
  %2929 = vst [vmem:[%s7 + $0x1f0] sm:$0xff] %v2863
  %2930 = vst [vmem:[%s7 + $0x1f8] sm:$0xff] %v2865
  // Predicated region
  $region30: #{nn_model_forward.1} parent=0 // pred_check
    _
  $region31: #{nn_model_forward.1} parent=0 // pred_check_branch
    %2932 = sbr.rel (0) target = $region33
  $region32: #{nn_model_forward.1} parent=0 // pred_region
    _
  $region33: #{nn_model_forward.1} parent=0 // pred_fallthru
    _
  // Predicated region
  $region34: #{nn_model_forward.1} parent=0 // pred_check
    _
  $region35: #{nn_model_forward.1} parent=0 // pred_check_branch
    %2934 = sbr.rel (0) target = $region37
  $region36: #{nn_model_forward.1} parent=0 // pred_region
    _
  $region37: #{nn_model_forward.1} parent=0 // pred_fallthru
    _

</llo_original>
